<compile_context>
chip_gen: v6e
topology: v6e:2x2x1
jax: 0.10.0
libtpu: 0.0.40
codegen_flags: <defaults>
</compile_context>

<pallas_src>
import jax
import jax.numpy as jnp
from jax.experimental import pallas as pl
from jax.experimental.pallas import tpu as pltpu

# ---------------- configuration (small synthetic shapes) ----------------
B = 512          # batch rows fed to the kernel
D_IN = 32        # raw input feature dim
H = 64           # encoder hidden dim
ENC_DIM = 32     # encoder output dim (encoder_dim)
N_CLASSES = 4    # multi-class head size

# fused head column layout (first TOTAL_OUT columns of the 128-lane slab):
#   col 0      -> LVEF        (sigmoid)
#   col 1      -> MVStenosis  (1 - sigmoid)       (name in the flip list)
#   cols 2..5  -> ViewClass   (softmax over classes)
#   col 6      -> LAVolume    (identity, bias = task.mean)
TOTAL_OUT = 1 + 1 + N_CLASSES + 1
OUT_PAD = 128    # lane-dense output width (head weights zero-padded to 128 cols)
REG_MEAN = 2.5

TASK_COLS = {
    "LVEF": (0, 1),
    "MVStenosis": (1, 2),
    "ViewClass": (2, 2 + N_CLASSES),
    "LAVolume": (2 + N_CLASSES, 3 + N_CLASSES),
}


def _tensorcores_per_chip() -> int:
    """One batch tile per TensorCore: 1 on v5e/v6e, 2 on dual-TC chips (v7x)."""
    try:
        kind = jax.devices()[0].device_kind.lower()
    except Exception:
        return 1
    if "v7" in kind or "v4" in kind:   # dual-TC / megacore chips
        return 2
    return 1


def _mtm_kernel(x_ref, w1_ref, b1_ref, w2h_ref, b2h_ref, out_ref):
    # ---- encoder layer 1: Linear -> ReLU (MXU + VPU) ----
    h = jnp.maximum(
        jnp.dot(x_ref[...], w1_ref[...], preferred_element_type=jnp.float32)
        + b1_ref[...],
        0.0)

    # ---- encoder layer 2 folded into the fused, lane-padded task heads ----
    # logits = (h @ W2 + b2) @ Wh + bh  ==  h @ (W2 @ Wh) + (b2 @ Wh + bh)
    logits = (jnp.dot(h, w2h_ref[...], preferred_element_type=jnp.float32)
              + b2h_ref[...])

    lane = jax.lax.broadcasted_iota(jnp.int32, logits.shape, dimension=1)
    in_bin = lane < 2
    in_mc = jnp.logical_and(lane >= 2, lane < 2 + N_CLASSES)

    # single full-width exp pass feeds both binary sigmoids and the softmax
    mc_logits = jnp.where(in_mc, logits, jnp.float32(-1e30))
    m = jnp.max(mc_logits, axis=1, keepdims=True)          # softmax row max
    z = jnp.where(in_bin, -logits,
        jnp.where(in_mc, mc_logits - m, jnp.float32(-1e30)))
    e = jnp.exp(z)                                          # one EUP pass

    sig = 1.0 / (1.0 + e)                                   # lanes 0/1: sigmoid
    denom = jnp.sum(jnp.where(in_mc, e, 0.0), axis=1, keepdims=True)
    sm = e / denom                                          # mc lanes: softmax

    result = jnp.where(lane == 0, sig,
             jnp.where(lane == 1, 1.0 - sig,
             jnp.where(in_mc, sm, logits)))
    out_ref[...] = result               # single lane-dense (TILE_B, 128) store


@jax.jit
def multi_task_forward(x, w1, b1, w2h, b2h):
    Bx = x.shape[0]

    # generation-aware grid: one tile per TensorCore, no host-side padding
    n_tc = _tensorcores_per_chip()
    n_tiles = max(1, min(n_tc, Bx // 8))
    tile_b = ((pl.cdiv(Bx, n_tiles) + 7) // 8) * 8          # sublane-aligned
    n_tiles = pl.cdiv(Bx, tile_b)

    def resident(shape):
        # weights / biases stay in VMEM across all batch tiles; single buffer
        n = len(shape)
        return pl.BlockSpec(shape, lambda i, _n=n: (0,) * _n,
                            pipeline_mode=pl.Buffered(1))

    flops = 2 * Bx * (D_IN * H + H * OUT_PAD)
    transcendentals = Bx * OUT_PAD                          # one exp pass
    bytes_accessed = 4 * (Bx * D_IN + D_IN * H + H + H * OUT_PAD + OUT_PAD
                          + Bx * OUT_PAD)

    out = pl.pallas_call(
        _mtm_kernel,
        out_shape=jax.ShapeDtypeStruct((Bx, OUT_PAD), jnp.float32),
        grid_spec=pl.GridSpec(
            grid=(n_tiles,),
            in_specs=[
                pl.BlockSpec((tile_b, D_IN), lambda i: (i, 0)),
                resident(w1.shape), resident(b1.shape),
                resident(w2h.shape), resident(b2h.shape),
            ],
            out_specs=pl.BlockSpec((tile_b, OUT_PAD), lambda i: (i, 0)),
        ),
        compiler_params=pltpu.CompilerParams(
            dimension_semantics=("parallel",)),
        cost_estimate=pl.CostEstimate(
            flops=flops,
            transcendentals=transcendentals,
            bytes_accessed=bytes_accessed),
    )(x, w1, b1, w2h, b2h)

    # per-task column slicing done outside the kernel (lane-dense slab inside)
    return {name: out[:, lo:hi] for name, (lo, hi) in TASK_COLS.items()}


def _init_params(key):
    """Deterministic parameter init (synthetic; no checkpoint load)."""
    k1, k2, k3 = jax.random.split(key, 3)
    scale1 = 1.0 / jnp.sqrt(jnp.float32(D_IN))
    scale2 = 1.0 / jnp.sqrt(jnp.float32(H))
    scale3 = 1.0 / jnp.sqrt(jnp.float32(ENC_DIM))
    w1 = jax.random.uniform(k1, (D_IN, H), jnp.float32, -scale1, scale1)
    b1 = jnp.zeros((1, H), jnp.float32)
    w2 = jax.random.uniform(k2, (H, ENC_DIM), jnp.float32, -scale2, scale2)
    b2 = jnp.zeros((1, ENC_DIM), jnp.float32)
    wh = jax.random.uniform(k3, (ENC_DIM, TOTAL_OUT), jnp.float32, -scale3, scale3)
    # bias: zeros, except regression head's bias = task.mean (as in __init__)
    bh = jnp.zeros((1, TOTAL_OUT), jnp.float32).at[0, TOTAL_OUT - 1].set(REG_MEAN)
    # zero-pad head weights/bias to the lane-dense 128-column slab
    wh_pad = jnp.zeros((ENC_DIM, OUT_PAD), jnp.float32).at[:, :TOTAL_OUT].set(wh)
    bh_pad = jnp.zeros((1, OUT_PAD), jnp.float32).at[:, :TOTAL_OUT].set(bh)
    return w1, b1, w2, b2, wh_pad, bh_pad


def _fold_head_params(w2, b2, wh_pad, bh_pad):
    """Fold the (purely linear) second encoder layer into the fused heads."""
    w2h = w2 @ wh_pad                     # (H, OUT_PAD)
    b2h = b2 @ wh_pad + bh_pad            # (1, OUT_PAD)
    return w2h, b2h


def _reference(x, w1, b1, w2, b2, wh_pad, bh_pad):
    """Unfolded reference (matches the PyTorch module's op order)."""
    h = jnp.maximum(x @ w1 + b1, 0.0)
    feat = h @ w2 + b2
    logits = feat @ wh_pad[:, :TOTAL_OUT] + bh_pad[:, :TOTAL_OUT]
    return {
        "LVEF": jax.nn.sigmoid(logits[:, 0:1]),
        "MVStenosis": 1.0 - jax.nn.sigmoid(logits[:, 1:2]),
        "ViewClass": jax.nn.softmax(logits[:, 2:2 + N_CLASSES], axis=1),
        "LAVolume": logits[:, 2 + N_CLASSES:2 + N_CLASSES + 1],
    }


if __name__ == "__main__":
    key = jax.random.PRNGKey(0)
    kx, kp = jax.random.split(key)
    x = jax.random.normal(kx, (B, D_IN), jnp.float32)
    w1, b1, w2, b2, wh_pad, bh_pad = _init_params(kp)
    w2h, b2h = _fold_head_params(w2, b2, wh_pad, bh_pad)   # fold once, offline

    out = multi_task_forward(x, w1, b1, w2h, b2h)
    out = jax.block_until_ready(out)

    ref = _reference(x, w1, b1, w2, b2, wh_pad, bh_pad)
    for name in ref:
        assert out[name].shape == ref[name].shape, name
        assert jnp.allclose(out[name], ref[name], atol=1e-5, rtol=1e-5), name

    # TODO(synk): the real encoder is an arbitrary injected nn.Module; modeled
    # here as a fixed 2-layer MLP with the same (B, encoder_dim) interface.
    print("KERNEL_OK")
</pallas_src>

<mosaic_0001>
module attributes {stable_mosaic.version = 11 : i64} {
  func.func @_mtm_kernel(%arg0: i32, %arg1: memref<512x32xf32, #tpu.memory_space<vmem>>, %arg2: memref<32x64xf32, #tpu.memory_space<vmem>>, %arg3: memref<1x64xf32, #tpu.memory_space<vmem>>, %arg4: memref<64x128xf32, #tpu.memory_space<vmem>>, %arg5: memref<1x128xf32, #tpu.memory_space<vmem>>, %arg6: memref<512x128xf32, #tpu.memory_space<vmem>>) attributes {dimension_semantics = [#tpu.dimension_semantics<parallel>], iteration_bounds = array<i64: 1>, scalar_prefetch = 0 : i64, scratch_operands = 0 : i64, tpu.core_type = #tpu.core_type<tc>, window_params = [{transform_indices = @transform_0, window_bounds = array<i64: 512, 32>}, {pipeline_mode = #tpu.pipeline_mode<synchronous>, transform_indices = @transform_1, window_bounds = array<i64: 32, 64>}, {pipeline_mode = #tpu.pipeline_mode<synchronous>, transform_indices = @transform_2, window_bounds = array<i64: 1, 64>}, {pipeline_mode = #tpu.pipeline_mode<synchronous>, transform_indices = @transform_3, window_bounds = array<i64: 64, 128>}, {pipeline_mode = #tpu.pipeline_mode<synchronous>, transform_indices = @transform_4, window_bounds = array<i64: 1, 128>}, {transform_indices = @transform_5, window_bounds = array<i64: 512, 128>}]} {
    %c0 = arith.constant 0 : index
    %c0_0 = arith.constant 0 : index
    %0 = vector.load %arg1[%c0, %c0_0] : memref<512x32xf32, #tpu.memory_space<vmem>>, vector<512x32xf32>
    %c0_1 = arith.constant 0 : index
    %c0_2 = arith.constant 0 : index
    %1 = vector.load %arg2[%c0_1, %c0_2] : memref<32x64xf32, #tpu.memory_space<vmem>>, vector<32x64xf32>
    %cst = arith.constant dense<0.000000e+00> : vector<512x64xf32>
    %2 = tpu.matmul %0, %1, %cst {dimension_numbers = #tpu.dot_dimension_numbers<[1], [0], [0], [1], [0, 0, 1, 1], [], []>} : vector<512x32xf32>, vector<32x64xf32>, vector<512x64xf32> -> vector<512x64xf32>
    %c0_3 = arith.constant 0 : index
    %c0_4 = arith.constant 0 : index
    %3 = vector.load %arg3[%c0_3, %c0_4] : memref<1x64xf32, #tpu.memory_space<vmem>>, vector<1x64xf32>
    %4 = vector.broadcast %3 : vector<1x64xf32> to vector<512x64xf32>
    %5 = arith.addf %2, %4 : vector<512x64xf32>
    %cst_5 = arith.constant 0.000000e+00 : f32
    %6 = vector.broadcast %cst_5 : f32 to vector<512x64xf32>
    %7 = arith.maximumf %5, %6 : vector<512x64xf32>
    %c0_6 = arith.constant 0 : index
    %c0_7 = arith.constant 0 : index
    %8 = vector.load %arg4[%c0_6, %c0_7] : memref<64x128xf32, #tpu.memory_space<vmem>>, vector<64x128xf32>
    %cst_8 = arith.constant dense<0.000000e+00> : vector<512x128xf32>
    %9 = tpu.matmul %7, %8, %cst_8 {dimension_numbers = #tpu.dot_dimension_numbers<[1], [0], [0], [1], [0, 0, 1, 1], [], []>} : vector<512x64xf32>, vector<64x128xf32>, vector<512x128xf32> -> vector<512x128xf32>
    %c0_9 = arith.constant 0 : index
    %c0_10 = arith.constant 0 : index
    %10 = vector.load %arg5[%c0_9, %c0_10] : memref<1x128xf32, #tpu.memory_space<vmem>>, vector<1x128xf32>
    %11 = vector.broadcast %10 : vector<1x128xf32> to vector<512x128xf32>
    %12 = arith.addf %9, %11 : vector<512x128xf32>
    %13 = tpu.iota {dimensions = array<i32: 1>} : vector<512x128xi32>
    %c2_i32 = arith.constant 2 : i32
    %14 = vector.broadcast %c2_i32 : i32 to vector<512x128xi32>
    %15 = arith.cmpi slt, %13, %14 : vector<512x128xi32>
    %c2_i32_11 = arith.constant 2 : i32
    %16 = vector.broadcast %c2_i32_11 : i32 to vector<512x128xi32>
    %17 = arith.cmpi sge, %13, %16 : vector<512x128xi32>
    %c6_i32 = arith.constant 6 : i32
    %18 = vector.broadcast %c6_i32 : i32 to vector<512x128xi32>
    %19 = arith.cmpi slt, %13, %18 : vector<512x128xi32>
    %20 = arith.andi %17, %19 : vector<512x128xi1>
    %cst_12 = arith.constant -1.000000e+30 : f32
    %21 = vector.broadcast %cst_12 : f32 to vector<512x128xf32>
    %22 = arith.select %20, %12, %21 : vector<512x128xi1>, vector<512x128xf32>
    %cst_13 = arith.constant dense<0xFF800000> : vector<512xf32>
    %23 = vector.multi_reduction <maximumf>, %22, %cst_13 [1] : vector<512x128xf32> to vector<512xf32>
    %24 = vector.shape_cast %23 : vector<512xf32> to vector<512x1xf32>
    %cst_14 = arith.constant 0.000000e+00 : f32
    %25 = vector.broadcast %cst_14 : f32 to vector<512x128xf32>
    %26 = arith.subf %25, %12 : vector<512x128xf32>
    %27 = vector.broadcast %24 : vector<512x1xf32> to vector<512x128xf32>
    %28 = arith.subf %22, %27 : vector<512x128xf32>
    %cst_15 = arith.constant -1.000000e+30 : f32
    %29 = vector.broadcast %cst_15 : f32 to vector<512x128xf32>
    %30 = arith.select %20, %28, %29 : vector<512x128xi1>, vector<512x128xf32>
    %31 = arith.select %15, %26, %30 : vector<512x128xi1>, vector<512x128xf32>
    %32 = math.exp %31 : vector<512x128xf32>
    %cst_16 = arith.constant 1.000000e+00 : f32
    %33 = vector.broadcast %cst_16 : f32 to vector<512x128xf32>
    %34 = arith.addf %33, %32 : vector<512x128xf32>
    %cst_17 = arith.constant 1.000000e+00 : f32
    %35 = vector.broadcast %cst_17 : f32 to vector<512x128xf32>
    %36 = arith.divf %35, %34 : vector<512x128xf32>
    %cst_18 = arith.constant 0.000000e+00 : f32
    %37 = vector.broadcast %cst_18 : f32 to vector<512x128xf32>
    %38 = arith.select %20, %32, %37 : vector<512x128xi1>, vector<512x128xf32>
    %cst_19 = arith.constant dense<0.000000e+00> : vector<512xf32>
    %39 = vector.multi_reduction <add>, %38, %cst_19 [1] : vector<512x128xf32> to vector<512xf32>
    %40 = vector.shape_cast %39 : vector<512xf32> to vector<512x1xf32>
    %41 = vector.broadcast %40 : vector<512x1xf32> to vector<512x128xf32>
    %42 = arith.divf %32, %41 : vector<512x128xf32>
    %c0_i32 = arith.constant 0 : i32
    %43 = vector.broadcast %c0_i32 : i32 to vector<512x128xi32>
    %44 = arith.cmpi eq, %13, %43 : vector<512x128xi32>
    %c1_i32 = arith.constant 1 : i32
    %45 = vector.broadcast %c1_i32 : i32 to vector<512x128xi32>
    %46 = arith.cmpi eq, %13, %45 : vector<512x128xi32>
    %cst_20 = arith.constant 1.000000e+00 : f32
    %47 = vector.broadcast %cst_20 : f32 to vector<512x128xf32>
    %48 = arith.subf %47, %36 : vector<512x128xf32>
    %49 = arith.select %20, %42, %12 : vector<512x128xi1>, vector<512x128xf32>
    %50 = arith.select %46, %48, %49 : vector<512x128xi1>, vector<512x128xf32>
    %51 = arith.select %44, %36, %50 : vector<512x128xi1>, vector<512x128xf32>
    %c0_21 = arith.constant 0 : index
    %c0_22 = arith.constant 0 : index
    %52 = vector.load %arg6[%c0_21, %c0_22] : memref<512x128xf32, #tpu.memory_space<vmem>>, vector<512x128xf32>
    tpu.vector_store %arg6[%c0_21, %c0_22], %51 {strides = array<i32>} : memref<512x128xf32, #tpu.memory_space<vmem>>, vector<512x128xf32>,
    return
  }
  func.func @transform_0(%arg0: i32) -> (i32, i32) {
    %c0_i32 = arith.constant 0 : i32
    %c0_i32_0 = arith.constant 0 : i32
    return %arg0, %c0_i32 : i32, i32
  }
  func.func @transform_1(%arg0: i32) -> (i32, i32) {
    %c0_i32 = arith.constant 0 : i32
    %c0_i32_0 = arith.constant 0 : i32
    %c0_i32_1 = arith.constant 0 : i32
    return %c0_i32, %c0_i32_0 : i32, i32
  }
  func.func @transform_2(%arg0: i32) -> (i32, i32) {
    %c0_i32 = arith.constant 0 : i32
    %c0_i32_0 = arith.constant 0 : i32
    %c0_i32_1 = arith.constant 0 : i32
    return %c0_i32, %c0_i32_0 : i32, i32
  }
  func.func @transform_3(%arg0: i32) -> (i32, i32) {
    %c0_i32 = arith.constant 0 : i32
    %c0_i32_0 = arith.constant 0 : i32
    %c0_i32_1 = arith.constant 0 : i32
    return %c0_i32, %c0_i32_0 : i32, i32
  }
  func.func @transform_4(%arg0: i32) -> (i32, i32) {
    %c0_i32 = arith.constant 0 : i32
    %c0_i32_0 = arith.constant 0 : i32
    %c0_i32_1 = arith.constant 0 : i32
    return %c0_i32, %c0_i32_0 : i32, i32
  }
  func.func @transform_5(%arg0: i32) -> (i32, i32) {
    %c0_i32 = arith.constant 0 : i32
    %c0_i32_0 = arith.constant 0 : i32
    return %arg0, %c0_i32 : i32, i32
  }
}

</mosaic_0001>

<llo_original>
// kernel: multi_task_forward.1
$region0: #{multi_task_forward.1}
  #allocation0 [shape = 'u32[]', space=smem, size = 0x4, offset = 0x4, fixed_abs, tag = 'smem constant byte address 0x4 - core index']
  #allocation1 [shape = 'u32[144,128]{1,0:T(1,128)}', space=vmem, size = 0x12000, scoped, tag = 'internal scratch']
  %s0 = inlined_call_operand.vmem [shape: f32[512,32], index: 0, kind: input, shape index: {}]
  %s1 = inlined_call_operand.vmem [shape: f32[32,64], index: 1, kind: input, shape index: {}]
  %s2 = inlined_call_operand.vmem [shape: f32[1,64], index: 2, kind: input, shape index: {}]
  %s3 = inlined_call_operand.vmem [shape: f32[64,128], index: 3, kind: input, shape index: {}]
  %s4 = inlined_call_operand.vmem [shape: f32[1,128], index: 4, kind: input, shape index: {}]
  %s5 = inlined_call_operand.vmem [shape: f32[512,128], index: 5, kind: output, shape index: {}]
  %s6 = sld [smem:[#allocation0]]
  $region30: #{multi_task_forward.1} parent=0
    _
  %s8 = ssub.s32 1, %s6
  %s9 = scalar_select 0, %s8, %s6
  // Predicated region
  $region2: #{multi_task_forward.1} parent=0 // pred_check
    _
  $region3: #{multi_task_forward.1} parent=0 // pred_check_branch
    %11 = sbr.rel (0) target = $region5
  $region4: #{multi_task_forward.1} parent=0 // pred_region
    _
  $region5: #{multi_task_forward.1} parent=0 // pred_fallthru
    _
  // Predicated region
  $region6: #{multi_task_forward.1} parent=0 // pred_check
    _
  $region7: #{multi_task_forward.1} parent=0 // pred_check_branch
    %13 = sbr.rel (0) target = $region9
  $region8: #{multi_task_forward.1} parent=0 // pred_region
    _
  $region9: #{multi_task_forward.1} parent=0 // pred_fallthru
    _
  // Predicated region
  $region10: #{multi_task_forward.1} parent=0 // pred_check
    _
  $region11: #{multi_task_forward.1} parent=0 // pred_check_branch
    %15 = sbr.rel (0) target = $region13
  $region12: #{multi_task_forward.1} parent=0 // pred_region
    _
  $region13: #{multi_task_forward.1} parent=0 // pred_fallthru
    _
  // Predicated region
  $region14: #{multi_task_forward.1} parent=0 // pred_check
    _
  $region15: #{multi_task_forward.1} parent=0 // pred_check_branch
    %17 = sbr.rel (0) target = $region17
  $region16: #{multi_task_forward.1} parent=0 // pred_region
    _
  $region17: #{multi_task_forward.1} parent=0 // pred_fallthru
    _
  // Predicated region
  $region18: #{multi_task_forward.1} parent=0 // pred_check
    _
  $region19: #{multi_task_forward.1} parent=0 // pred_check_branch
    %19 = sbr.rel (0) target = $region21
  $region20: #{multi_task_forward.1} parent=0 // pred_region
    _
  $region21: #{multi_task_forward.1} parent=0 // pred_fallthru
    _
  %v20 = vld [vmem:[%s0] sm:$0xff]
  %v21 = vld [vmem:[%s0 + $0x8] sm:$0xff]
  %v22 = vld [vmem:[%s0 + $0x10] sm:$0xff]
  %v23 = vld [vmem:[%s0 + $0x18] sm:$0xff]
  %v24 = vld [vmem:[%s0 + $0x20] sm:$0xff]
  %v25 = vld [vmem:[%s0 + $0x28] sm:$0xff]
  %v26 = vld [vmem:[%s0 + $0x30] sm:$0xff]
  %v27 = vld [vmem:[%s0 + $0x38] sm:$0xff]
  %v28 = vld [vmem:[%s0 + $0x40] sm:$0xff]
  %v29 = vld [vmem:[%s0 + $0x48] sm:$0xff]
  %v30 = vld [vmem:[%s0 + $0x50] sm:$0xff]
  %v31 = vld [vmem:[%s0 + $0x58] sm:$0xff]
  %v32 = vld [vmem:[%s0 + $0x60] sm:$0xff]
  %v33 = vld [vmem:[%s0 + $0x68] sm:$0xff]
  %v34 = vld [vmem:[%s0 + $0x70] sm:$0xff]
  %v35 = vld [vmem:[%s0 + $0x78] sm:$0xff]
  %v36 = vld [vmem:[%s0 + $0x80] sm:$0xff]
  %v37 = vld [vmem:[%s0 + $0x88] sm:$0xff]
  %v38 = vld [vmem:[%s0 + $0x90] sm:$0xff]
  %v39 = vld [vmem:[%s0 + $0x98] sm:$0xff]
  %v40 = vld [vmem:[%s0 + $0xa0] sm:$0xff]
  %v41 = vld [vmem:[%s0 + $0xa8] sm:$0xff]
  %v42 = vld [vmem:[%s0 + $0xb0] sm:$0xff]
  %v43 = vld [vmem:[%s0 + $0xb8] sm:$0xff]
  %v44 = vld [vmem:[%s0 + $0xc0] sm:$0xff]
  %v45 = vld [vmem:[%s0 + $0xc8] sm:$0xff]
  %v46 = vld [vmem:[%s0 + $0xd0] sm:$0xff]
  %v47 = vld [vmem:[%s0 + $0xd8] sm:$0xff]
  %v48 = vld [vmem:[%s0 + $0xe0] sm:$0xff]
  %v49 = vld [vmem:[%s0 + $0xe8] sm:$0xff]
  %v50 = vld [vmem:[%s0 + $0xf0] sm:$0xff]
  %v51 = vld [vmem:[%s0 + $0xf8] sm:$0xff]
  %v52 = vld [vmem:[%s0 + $0x100] sm:$0xff]
  %v53 = vld [vmem:[%s0 + $0x108] sm:$0xff]
  %v54 = vld [vmem:[%s0 + $0x110] sm:$0xff]
  %v55 = vld [vmem:[%s0 + $0x118] sm:$0xff]
  %v56 = vld [vmem:[%s0 + $0x120] sm:$0xff]
  %v57 = vld [vmem:[%s0 + $0x128] sm:$0xff]
  %v58 = vld [vmem:[%s0 + $0x130] sm:$0xff]
  %v59 = vld [vmem:[%s0 + $0x138] sm:$0xff]
  %v60 = vld [vmem:[%s0 + $0x140] sm:$0xff]
  %v61 = vld [vmem:[%s0 + $0x148] sm:$0xff]
  %v62 = vld [vmem:[%s0 + $0x150] sm:$0xff]
  %v63 = vld [vmem:[%s0 + $0x158] sm:$0xff]
  %v64 = vld [vmem:[%s0 + $0x160] sm:$0xff]
  %v65 = vld [vmem:[%s0 + $0x168] sm:$0xff]
  %v66 = vld [vmem:[%s0 + $0x170] sm:$0xff]
  %v67 = vld [vmem:[%s0 + $0x178] sm:$0xff]
  %v68 = vld [vmem:[%s0 + $0x180] sm:$0xff]
  %v69 = vld [vmem:[%s0 + $0x188] sm:$0xff]
  %v70 = vld [vmem:[%s0 + $0x190] sm:$0xff]
  %v71 = vld [vmem:[%s0 + $0x198] sm:$0xff]
  %v72 = vld [vmem:[%s0 + $0x1a0] sm:$0xff]
  %v73 = vld [vmem:[%s0 + $0x1a8] sm:$0xff]
  %v74 = vld [vmem:[%s0 + $0x1b0] sm:$0xff]
  %v75 = vld [vmem:[%s0 + $0x1b8] sm:$0xff]
  %v76 = vld [vmem:[%s0 + $0x1c0] sm:$0xff]
  %v77 = vld [vmem:[%s0 + $0x1c8] sm:$0xff]
  %v78 = vld [vmem:[%s0 + $0x1d0] sm:$0xff]
  %v79 = vld [vmem:[%s0 + $0x1d8] sm:$0xff]
  %v80 = vld [vmem:[%s0 + $0x1e0] sm:$0xff]
  %v81 = vld [vmem:[%s0 + $0x1e8] sm:$0xff]
  %v82 = vld [vmem:[%s0 + $0x1f0] sm:$0xff]
  %v83 = vld [vmem:[%s0 + $0x1f8] sm:$0xff]
  %v84 = vld [vmem:[%s1] sm:$0xff]
  %v85 = vld [vmem:[%s1 + $0x8] sm:$0xff]
  %v86 = vld [vmem:[%s1 + $0x10] sm:$0xff]
  %v87 = vld [vmem:[%s1 + $0x18] sm:$0xff]
  %v88 = vld [vmem:[%s2] sm:$0x1]
  %v90 = vlaneseq
  %v91 = vshrl.u32 %v90, 7
  %v92 = vsub.s32 0, %v91
  %v93 = vrot.slane %v88, %v92
  %vm95 = vcmask 261120
  %v97 = vsel %vm95, %v20, 0
  %v100 = vsel %vm95, %v21, 0
  %v103 = vsel %vm95, %v22, 0
  %v106 = vsel %vm95, %v23, 0
  %v109 = vsel %vm95, %v24, 0
  %v112 = vsel %vm95, %v25, 0
  %v115 = vsel %vm95, %v26, 0
  %v118 = vsel %vm95, %v27, 0
  %v121 = vsel %vm95, %v28, 0
  %v124 = vsel %vm95, %v29, 0
  %v127 = vsel %vm95, %v30, 0
  %v130 = vsel %vm95, %v31, 0
  %v133 = vsel %vm95, %v32, 0
  %v136 = vsel %vm95, %v33, 0
  %v139 = vsel %vm95, %v34, 0
  %v142 = vsel %vm95, %v35, 0
  %v145 = vsel %vm95, %v36, 0
  %v148 = vsel %vm95, %v37, 0
  %v151 = vsel %vm95, %v38, 0
  %v154 = vsel %vm95, %v39, 0
  %v157 = vsel %vm95, %v40, 0
  %v160 = vsel %vm95, %v41, 0
  %v163 = vsel %vm95, %v42, 0
  %v166 = vsel %vm95, %v43, 0
  %v169 = vsel %vm95, %v44, 0
  %v172 = vsel %vm95, %v45, 0
  %v175 = vsel %vm95, %v46, 0
  %v178 = vsel %vm95, %v47, 0
  %v181 = vsel %vm95, %v48, 0
  %v184 = vsel %vm95, %v49, 0
  %v187 = vsel %vm95, %v50, 0
  %v190 = vsel %vm95, %v51, 0
  %v193 = vsel %vm95, %v52, 0
  %v196 = vsel %vm95, %v53, 0
  %v199 = vsel %vm95, %v54, 0
  %v202 = vsel %vm95, %v55, 0
  %v205 = vsel %vm95, %v56, 0
  %v208 = vsel %vm95, %v57, 0
  %v211 = vsel %vm95, %v58, 0
  %v214 = vsel %vm95, %v59, 0
  %v217 = vsel %vm95, %v60, 0
  %v220 = vsel %vm95, %v61, 0
  %v223 = vsel %vm95, %v62, 0
  %v226 = vsel %vm95, %v63, 0
  %v229 = vsel %vm95, %v64, 0
  %v232 = vsel %vm95, %v65, 0
  %v235 = vsel %vm95, %v66, 0
  %v238 = vsel %vm95, %v67, 0
  %v241 = vsel %vm95, %v68, 0
  %v244 = vsel %vm95, %v69, 0
  %v247 = vsel %vm95, %v70, 0
  %v250 = vsel %vm95, %v71, 0
  %v253 = vsel %vm95, %v72, 0
  %v256 = vsel %vm95, %v73, 0
  %v259 = vsel %vm95, %v74, 0
  %v262 = vsel %vm95, %v75, 0
  %v265 = vsel %vm95, %v76, 0
  %v268 = vsel %vm95, %v77, 0
  %v271 = vsel %vm95, %v78, 0
  %v274 = vsel %vm95, %v79, 0
  %v277 = vsel %vm95, %v80, 0
  %v280 = vsel %vm95, %v81, 0
  %v283 = vsel %vm95, %v82, 0
  %v286 = vsel %vm95, %v83, 0
  %288 = vmatprep.subr.mxu0 0.0
  %289 = vmatpush1.msra.mxu0 0.0
  %290 = vmatprep.subr.mxu0 0.0
  %291 = vmatpush1.msra.mxu0 0.0
  %292 = vmatprep.subr.mxu0 0.0
  %293 = vmatpush1.msra.mxu0 0.0
  %294 = vmatprep.subr.mxu0 0.0
  %295 = vmatpush1.msra.mxu0 0.0
  %296 = vmatprep.subr.mxu0 0.0
  %297 = vmatpush1.msra.mxu0 0.0
  %298 = vmatprep.subr.mxu0 0.0
  %299 = vmatpush1.msra.mxu0 0.0
  %300 = vmatprep.subr.mxu0 0.0
  %301 = vmatpush1.msra.mxu0 0.0
  %302 = vmatprep.subr.mxu0 0.0
  %303 = vmatpush1.msra.mxu0 0.0
  %304 = vmatprep.subr.mxu0 0.0
  %305 = vmatpush1.msra.mxu0 0.0
  %306 = vmatprep.subr.mxu0 0.0
  %307 = vmatpush1.msra.mxu0 0.0
  %308 = vmatprep.subr.mxu0 0.0
  %309 = vmatpush1.msra.mxu0 0.0
  %310 = vmatprep.subr.mxu0 0.0
  %311 = vmatpush1.msra.mxu0 0.0
  %312 = vmatprep.subr.mxu0 0.0
  %313 = vmatpush1.msra.mxu0 %v87
  %314 = vmatprep.subr.mxu0 0.0
  %315 = vmatpush1.msra.mxu0 %v86
  %316 = vmatprep.subr.mxu0 0.0
  %317 = vmatpush1.msra.mxu0 %v85
  %318 = vmatprep.subr.mxu0 0.0
  %319 = vmatpush1.msra.mxu0 %v84
  %320 = vmatprep.subr.mxu0 0.0
  %321 = vmatpush2.msra.mxu0 0.0
  %322 = vmatprep.subr.mxu0 0.0
  %323 = vmatpush2.msra.mxu0 0.0
  %324 = vmatprep.subr.mxu0 0.0
  %325 = vmatpush2.msra.mxu0 0.0
  %326 = vmatprep.subr.mxu0 0.0
  %327 = vmatpush2.msra.mxu0 0.0
  %328 = vmatprep.subr.mxu0 0.0
  %329 = vmatpush2.msra.mxu0 0.0
  %330 = vmatprep.subr.mxu0 0.0
  %331 = vmatpush2.msra.mxu0 0.0
  %332 = vmatprep.subr.mxu0 0.0
  %333 = vmatpush2.msra.mxu0 0.0
  %334 = vmatprep.subr.mxu0 0.0
  %335 = vmatpush2.msra.mxu0 0.0
  %336 = vmatprep.subr.mxu0 0.0
  %337 = vmatpush2.msra.mxu0 0.0
  %338 = vmatprep.subr.mxu0 0.0
  %339 = vmatpush2.msra.mxu0 0.0
  %340 = vmatprep.subr.mxu0 0.0
  %341 = vmatpush2.msra.mxu0 0.0
  %342 = vmatprep.subr.mxu0 0.0
  %343 = vmatpush2.msra.mxu0 0.0
  %344 = vmatprep.subr.mxu0 0.0
  %345 = vmatpush2.msra.mxu0 0.0
  %346 = vmatprep.subr.mxu0 0.0
  %347 = vmatpush2.msra.mxu0 0.0
  %348 = vmatprep.subr.mxu0 0.0
  %349 = vmatpush2.msra.mxu0 0.0
  %350 = vmatprep.subr.mxu0 0.0
  %351 = vmatpush2.msra.mxu0 0.0
  %352 = vmatprep.mubr.f32.mxu0 0.0
  %353 = vmatmul.mubr.f32.gmra.mxu0 %v97
  %v354 = vpop.f32.mrf.mxu0
  %v355 = vadd.f32 %v93, %v354
  %v356 = vpop.f32.mrf.mxu0
  %357 = vmatprep.mubr.f32.mxu0 0.0
  %358 = vmatmul.mubr.f32.gmra.mxu0 %v100
  %v359 = vpop.f32.mrf.mxu0
  %v360 = vadd.f32 %v93, %v359
  %v361 = vpop.f32.mrf.mxu0
  %362 = vmatprep.mubr.f32.mxu0 0.0
  %363 = vmatmul.mubr.f32.gmra.mxu0 %v103
  %v364 = vpop.f32.mrf.mxu0
  %v365 = vadd.f32 %v93, %v364
  %v366 = vpop.f32.mrf.mxu0
  %367 = vmatprep.mubr.f32.mxu0 0.0
  %368 = vmatmul.mubr.f32.gmra.mxu0 %v106
  %v369 = vpop.f32.mrf.mxu0
  %v370 = vadd.f32 %v93, %v369
  %v371 = vpop.f32.mrf.mxu0
  %372 = vmatprep.mubr.f32.mxu0 0.0
  %373 = vmatmul.mubr.f32.gmra.mxu0 %v109
  %v374 = vpop.f32.mrf.mxu0
  %v375 = vadd.f32 %v93, %v374
  %v376 = vpop.f32.mrf.mxu0
  %377 = vmatprep.mubr.f32.mxu0 0.0
  %378 = vmatmul.mubr.f32.gmra.mxu0 %v112
  %v379 = vpop.f32.mrf.mxu0
  %v380 = vadd.f32 %v93, %v379
  %v381 = vpop.f32.mrf.mxu0
  %382 = vmatprep.mubr.f32.mxu0 0.0
  %383 = vmatmul.mubr.f32.gmra.mxu0 %v115
  %v384 = vpop.f32.mrf.mxu0
  %v385 = vadd.f32 %v93, %v384
  %v386 = vpop.f32.mrf.mxu0
  %387 = vmatprep.mubr.f32.mxu0 0.0
  %388 = vmatmul.mubr.f32.gmra.mxu0 %v118
  %v389 = vpop.f32.mrf.mxu0
  %v390 = vadd.f32 %v93, %v389
  %v391 = vpop.f32.mrf.mxu0
  %392 = vmatprep.mubr.f32.mxu0 0.0
  %393 = vmatmul.mubr.f32.gmra.mxu0 %v121
  %v394 = vpop.f32.mrf.mxu0
  %v395 = vadd.f32 %v93, %v394
  %v396 = vpop.f32.mrf.mxu0
  %397 = vmatprep.mubr.f32.mxu0 0.0
  %398 = vmatmul.mubr.f32.gmra.mxu0 %v124
  %v399 = vpop.f32.mrf.mxu0
  %v400 = vadd.f32 %v93, %v399
  %v401 = vpop.f32.mrf.mxu0
  %402 = vmatprep.mubr.f32.mxu0 0.0
  %403 = vmatmul.mubr.f32.gmra.mxu0 %v127
  %v404 = vpop.f32.mrf.mxu0
  %v405 = vadd.f32 %v93, %v404
  %v406 = vpop.f32.mrf.mxu0
  %407 = vmatprep.mubr.f32.mxu0 0.0
  %408 = vmatmul.mubr.f32.gmra.mxu0 %v130
  %v409 = vpop.f32.mrf.mxu0
  %v410 = vadd.f32 %v93, %v409
  %v411 = vpop.f32.mrf.mxu0
  %412 = vmatprep.mubr.f32.mxu0 0.0
  %413 = vmatmul.mubr.f32.gmra.mxu0 %v133
  %v414 = vpop.f32.mrf.mxu0
  %v415 = vadd.f32 %v93, %v414
  %v416 = vpop.f32.mrf.mxu0
  %417 = vmatprep.mubr.f32.mxu0 0.0
  %418 = vmatmul.mubr.f32.gmra.mxu0 %v136
  %v419 = vpop.f32.mrf.mxu0
  %v420 = vadd.f32 %v93, %v419
  %v421 = vpop.f32.mrf.mxu0
  %422 = vmatprep.mubr.f32.mxu0 0.0
  %423 = vmatmul.mubr.f32.gmra.mxu0 %v139
  %v424 = vpop.f32.mrf.mxu0
  %v425 = vadd.f32 %v93, %v424
  %v426 = vpop.f32.mrf.mxu0
  %427 = vmatprep.mubr.f32.mxu0 0.0
  %428 = vmatmul.mubr.f32.gmra.mxu0 %v142
  %v429 = vpop.f32.mrf.mxu0
  %v430 = vadd.f32 %v93, %v429
  %v431 = vpop.f32.mrf.mxu0
  %432 = vmatprep.mubr.f32.mxu0 0.0
  %433 = vmatmul.mubr.f32.gmra.mxu0 %v145
  %v434 = vpop.f32.mrf.mxu0
  %v435 = vadd.f32 %v93, %v434
  %v436 = vpop.f32.mrf.mxu0
  %437 = vmatprep.mubr.f32.mxu0 0.0
  %438 = vmatmul.mubr.f32.gmra.mxu0 %v148
  %v439 = vpop.f32.mrf.mxu0
  %v440 = vadd.f32 %v93, %v439
  %v441 = vpop.f32.mrf.mxu0
  %442 = vmatprep.mubr.f32.mxu0 0.0
  %443 = vmatmul.mubr.f32.gmra.mxu0 %v151
  %v444 = vpop.f32.mrf.mxu0
  %v445 = vadd.f32 %v93, %v444
  %v446 = vpop.f32.mrf.mxu0
  %447 = vmatprep.mubr.f32.mxu0 0.0
  %448 = vmatmul.mubr.f32.gmra.mxu0 %v154
  %v449 = vpop.f32.mrf.mxu0
  %v450 = vadd.f32 %v93, %v449
  %v451 = vpop.f32.mrf.mxu0
  %452 = vmatprep.mubr.f32.mxu0 0.0
  %453 = vmatmul.mubr.f32.gmra.mxu0 %v157
  %v454 = vpop.f32.mrf.mxu0
  %v455 = vadd.f32 %v93, %v454
  %v456 = vpop.f32.mrf.mxu0
  %457 = vmatprep.mubr.f32.mxu0 0.0
  %458 = vmatmul.mubr.f32.gmra.mxu0 %v160
  %v459 = vpop.f32.mrf.mxu0
  %v460 = vadd.f32 %v93, %v459
  %v461 = vpop.f32.mrf.mxu0
  %462 = vmatprep.mubr.f32.mxu0 0.0
  %463 = vmatmul.mubr.f32.gmra.mxu0 %v163
  %v464 = vpop.f32.mrf.mxu0
  %v465 = vadd.f32 %v93, %v464
  %v466 = vpop.f32.mrf.mxu0
  %467 = vmatprep.mubr.f32.mxu0 0.0
  %468 = vmatmul.mubr.f32.gmra.mxu0 %v166
  %v469 = vpop.f32.mrf.mxu0
  %v470 = vadd.f32 %v93, %v469
  %v471 = vpop.f32.mrf.mxu0
  %472 = vmatprep.mubr.f32.mxu0 0.0
  %473 = vmatmul.mubr.f32.gmra.mxu0 %v169
  %v474 = vpop.f32.mrf.mxu0
  %v475 = vadd.f32 %v93, %v474
  %v476 = vpop.f32.mrf.mxu0
  %477 = vmatprep.mubr.f32.mxu0 0.0
  %478 = vmatmul.mubr.f32.gmra.mxu0 %v172
  %v479 = vpop.f32.mrf.mxu0
  %v480 = vadd.f32 %v93, %v479
  %v481 = vpop.f32.mrf.mxu0
  %482 = vmatprep.mubr.f32.mxu0 0.0
  %483 = vmatmul.mubr.f32.gmra.mxu0 %v175
  %v484 = vpop.f32.mrf.mxu0
  %v485 = vadd.f32 %v93, %v484
  %v486 = vpop.f32.mrf.mxu0
  %487 = vmatprep.mubr.f32.mxu0 0.0
  %488 = vmatmul.mubr.f32.gmra.mxu0 %v178
  %v489 = vpop.f32.mrf.mxu0
  %v490 = vadd.f32 %v93, %v489
  %v491 = vpop.f32.mrf.mxu0
  %492 = vmatprep.mubr.f32.mxu0 0.0
  %493 = vmatmul.mubr.f32.gmra.mxu0 %v181
  %v494 = vpop.f32.mrf.mxu0
  %v495 = vadd.f32 %v93, %v494
  %v496 = vpop.f32.mrf.mxu0
  %497 = vmatprep.mubr.f32.mxu0 0.0
  %498 = vmatmul.mubr.f32.gmra.mxu0 %v184
  %v499 = vpop.f32.mrf.mxu0
  %v500 = vadd.f32 %v93, %v499
  %v501 = vpop.f32.mrf.mxu0
  %502 = vmatprep.mubr.f32.mxu0 0.0
  %503 = vmatmul.mubr.f32.gmra.mxu0 %v187
  %v504 = vpop.f32.mrf.mxu0
  %v505 = vadd.f32 %v93, %v504
  %v506 = vpop.f32.mrf.mxu0
  %507 = vmatprep.mubr.f32.mxu0 0.0
  %508 = vmatmul.mubr.f32.gmra.mxu0 %v190
  %v509 = vpop.f32.mrf.mxu0
  %v510 = vadd.f32 %v93, %v509
  %v511 = vpop.f32.mrf.mxu0
  %512 = vmatprep.mubr.f32.mxu0 0.0
  %513 = vmatmul.mubr.f32.gmra.mxu0 %v193
  %v514 = vpop.f32.mrf.mxu0
  %v515 = vadd.f32 %v93, %v514
  %v516 = vpop.f32.mrf.mxu0
  %517 = vmatprep.mubr.f32.mxu0 0.0
  %518 = vmatmul.mubr.f32.gmra.mxu0 %v196
  %v519 = vpop.f32.mrf.mxu0
  %v520 = vadd.f32 %v93, %v519
  %v521 = vpop.f32.mrf.mxu0
  %522 = vmatprep.mubr.f32.mxu0 0.0
  %523 = vmatmul.mubr.f32.gmra.mxu0 %v199
  %v524 = vpop.f32.mrf.mxu0
  %v525 = vadd.f32 %v93, %v524
  %v526 = vpop.f32.mrf.mxu0
  %527 = vmatprep.mubr.f32.mxu0 0.0
  %528 = vmatmul.mubr.f32.gmra.mxu0 %v202
  %v529 = vpop.f32.mrf.mxu0
  %v530 = vadd.f32 %v93, %v529
  %v531 = vpop.f32.mrf.mxu0
  %532 = vmatprep.mubr.f32.mxu0 0.0
  %533 = vmatmul.mubr.f32.gmra.mxu0 %v205
  %v534 = vpop.f32.mrf.mxu0
  %v535 = vadd.f32 %v93, %v534
  %v536 = vpop.f32.mrf.mxu0
  %537 = vmatprep.mubr.f32.mxu0 0.0
  %538 = vmatmul.mubr.f32.gmra.mxu0 %v208
  %v539 = vpop.f32.mrf.mxu0
  %v540 = vadd.f32 %v93, %v539
  %v541 = vpop.f32.mrf.mxu0
  %542 = vmatprep.mubr.f32.mxu0 0.0
  %543 = vmatmul.mubr.f32.gmra.mxu0 %v211
  %v544 = vpop.f32.mrf.mxu0
  %v545 = vadd.f32 %v93, %v544
  %v546 = vpop.f32.mrf.mxu0
  %547 = vmatprep.mubr.f32.mxu0 0.0
  %548 = vmatmul.mubr.f32.gmra.mxu0 %v214
  %v549 = vpop.f32.mrf.mxu0
  %v550 = vadd.f32 %v93, %v549
  %v551 = vpop.f32.mrf.mxu0
  %552 = vmatprep.mubr.f32.mxu0 0.0
  %553 = vmatmul.mubr.f32.gmra.mxu0 %v217
  %v554 = vpop.f32.mrf.mxu0
  %v555 = vadd.f32 %v93, %v554
  %v556 = vpop.f32.mrf.mxu0
  %557 = vmatprep.mubr.f32.mxu0 0.0
  %558 = vmatmul.mubr.f32.gmra.mxu0 %v220
  %v559 = vpop.f32.mrf.mxu0
  %v560 = vadd.f32 %v93, %v559
  %v561 = vpop.f32.mrf.mxu0
  %562 = vmatprep.mubr.f32.mxu0 0.0
  %563 = vmatmul.mubr.f32.gmra.mxu0 %v223
  %v564 = vpop.f32.mrf.mxu0
  %v565 = vadd.f32 %v93, %v564
  %v566 = vpop.f32.mrf.mxu0
  %567 = vmatprep.mubr.f32.mxu0 0.0
  %568 = vmatmul.mubr.f32.gmra.mxu0 %v226
  %v569 = vpop.f32.mrf.mxu0
  %v570 = vadd.f32 %v93, %v569
  %v571 = vpop.f32.mrf.mxu0
  %572 = vmatprep.mubr.f32.mxu0 0.0
  %573 = vmatmul.mubr.f32.gmra.mxu0 %v229
  %v574 = vpop.f32.mrf.mxu0
  %v575 = vadd.f32 %v93, %v574
  %v576 = vpop.f32.mrf.mxu0
  %577 = vmatprep.mubr.f32.mxu0 0.0
  %578 = vmatmul.mubr.f32.gmra.mxu0 %v232
  %v579 = vpop.f32.mrf.mxu0
  %v580 = vadd.f32 %v93, %v579
  %v581 = vpop.f32.mrf.mxu0
  %582 = vmatprep.mubr.f32.mxu0 0.0
  %583 = vmatmul.mubr.f32.gmra.mxu0 %v235
  %v584 = vpop.f32.mrf.mxu0
  %v585 = vadd.f32 %v93, %v584
  %v586 = vpop.f32.mrf.mxu0
  %587 = vmatprep.mubr.f32.mxu0 0.0
  %588 = vmatmul.mubr.f32.gmra.mxu0 %v238
  %v589 = vpop.f32.mrf.mxu0
  %v590 = vadd.f32 %v93, %v589
  %v591 = vpop.f32.mrf.mxu0
  %592 = vmatprep.mubr.f32.mxu0 0.0
  %593 = vmatmul.mubr.f32.gmra.mxu0 %v241
  %v594 = vpop.f32.mrf.mxu0
  %v595 = vadd.f32 %v93, %v594
  %v596 = vpop.f32.mrf.mxu0
  %597 = vmatprep.mubr.f32.mxu0 0.0
  %598 = vmatmul.mubr.f32.gmra.mxu0 %v244
  %v599 = vpop.f32.mrf.mxu0
  %v600 = vadd.f32 %v93, %v599
  %v601 = vpop.f32.mrf.mxu0
  %602 = vmatprep.mubr.f32.mxu0 0.0
  %603 = vmatmul.mubr.f32.gmra.mxu0 %v247
  %v604 = vpop.f32.mrf.mxu0
  %v605 = vadd.f32 %v93, %v604
  %v606 = vpop.f32.mrf.mxu0
  %607 = vmatprep.mubr.f32.mxu0 0.0
  %608 = vmatmul.mubr.f32.gmra.mxu0 %v250
  %v609 = vpop.f32.mrf.mxu0
  %v610 = vadd.f32 %v93, %v609
  %v611 = vpop.f32.mrf.mxu0
  %612 = vmatprep.mubr.f32.mxu0 0.0
  %613 = vmatmul.mubr.f32.gmra.mxu0 %v253
  %v614 = vpop.f32.mrf.mxu0
  %v615 = vadd.f32 %v93, %v614
  %v616 = vpop.f32.mrf.mxu0
  %617 = vmatprep.mubr.f32.mxu0 0.0
  %618 = vmatmul.mubr.f32.gmra.mxu0 %v256
  %v619 = vpop.f32.mrf.mxu0
  %v620 = vadd.f32 %v93, %v619
  %v621 = vpop.f32.mrf.mxu0
  %622 = vmatprep.mubr.f32.mxu0 0.0
  %623 = vmatmul.mubr.f32.gmra.mxu0 %v259
  %v624 = vpop.f32.mrf.mxu0
  %v625 = vadd.f32 %v93, %v624
  %v626 = vpop.f32.mrf.mxu0
  %627 = vmatprep.mubr.f32.mxu0 0.0
  %628 = vmatmul.mubr.f32.gmra.mxu0 %v262
  %v629 = vpop.f32.mrf.mxu0
  %v630 = vadd.f32 %v93, %v629
  %v631 = vpop.f32.mrf.mxu0
  %632 = vmatprep.mubr.f32.mxu0 0.0
  %633 = vmatmul.mubr.f32.gmra.mxu0 %v265
  %v634 = vpop.f32.mrf.mxu0
  %v635 = vadd.f32 %v93, %v634
  %v636 = vpop.f32.mrf.mxu0
  %637 = vmatprep.mubr.f32.mxu0 0.0
  %638 = vmatmul.mubr.f32.gmra.mxu0 %v268
  %v639 = vpop.f32.mrf.mxu0
  %v640 = vadd.f32 %v93, %v639
  %v641 = vpop.f32.mrf.mxu0
  %642 = vmatprep.mubr.f32.mxu0 0.0
  %643 = vmatmul.mubr.f32.gmra.mxu0 %v271
  %v644 = vpop.f32.mrf.mxu0
  %v645 = vadd.f32 %v93, %v644
  %v646 = vpop.f32.mrf.mxu0
  %647 = vmatprep.mubr.f32.mxu0 0.0
  %648 = vmatmul.mubr.f32.gmra.mxu0 %v274
  %v649 = vpop.f32.mrf.mxu0
  %v650 = vadd.f32 %v93, %v649
  %v651 = vpop.f32.mrf.mxu0
  %652 = vmatprep.mubr.f32.mxu0 0.0
  %653 = vmatmul.mubr.f32.gmra.mxu0 %v277
  %v654 = vpop.f32.mrf.mxu0
  %v655 = vadd.f32 %v93, %v654
  %v656 = vpop.f32.mrf.mxu0
  %657 = vmatprep.mubr.f32.mxu0 0.0
  %658 = vmatmul.mubr.f32.gmra.mxu0 %v280
  %v659 = vpop.f32.mrf.mxu0
  %v660 = vadd.f32 %v93, %v659
  %v661 = vpop.f32.mrf.mxu0
  %662 = vmatprep.mubr.f32.mxu0 0.0
  %663 = vmatmul.mubr.f32.gmra.mxu0 %v283
  %v664 = vpop.f32.mrf.mxu0
  %v665 = vadd.f32 %v93, %v664
  %v666 = vpop.f32.mrf.mxu0
  %667 = vmatprep.mubr.f32.mxu0 0.0
  %668 = vmatmul.mubr.f32.gmra.mxu0 %v286
  %v669 = vpop.f32.mrf.mxu0
  %v670 = vadd.f32 %v93, %v669
  %v671 = vpop.f32.mrf.mxu0
  %672 = vdwg.mxu0
  %v673 = vmax.f32 %v355, 0.0
  %v674 = vmax.f32 %v360, 0.0
  %v675 = vmax.f32 %v365, 0.0
  %v676 = vmax.f32 %v370, 0.0
  %v677 = vmax.f32 %v375, 0.0
  %v678 = vmax.f32 %v380, 0.0
  %v679 = vmax.f32 %v385, 0.0
  %v680 = vmax.f32 %v390, 0.0
  %v681 = vmax.f32 %v395, 0.0
  %v682 = vmax.f32 %v400, 0.0
  %v683 = vmax.f32 %v405, 0.0
  %v684 = vmax.f32 %v410, 0.0
  %v685 = vmax.f32 %v415, 0.0
  %v686 = vmax.f32 %v420, 0.0
  %v687 = vmax.f32 %v425, 0.0
  %v688 = vmax.f32 %v430, 0.0
  %v689 = vmax.f32 %v435, 0.0
  %v690 = vmax.f32 %v440, 0.0
  %v691 = vmax.f32 %v445, 0.0
  %v692 = vmax.f32 %v450, 0.0
  %v693 = vmax.f32 %v455, 0.0
  %v694 = vmax.f32 %v460, 0.0
  %v695 = vmax.f32 %v465, 0.0
  %v696 = vmax.f32 %v470, 0.0
  %v697 = vmax.f32 %v475, 0.0
  %v698 = vmax.f32 %v480, 0.0
  %v699 = vmax.f32 %v485, 0.0
  %v700 = vmax.f32 %v490, 0.0
  %v701 = vmax.f32 %v495, 0.0
  %v702 = vmax.f32 %v500, 0.0
  %v703 = vmax.f32 %v505, 0.0
  %v704 = vmax.f32 %v510, 0.0
  %v705 = vmax.f32 %v515, 0.0
  %v706 = vmax.f32 %v520, 0.0
  %v707 = vmax.f32 %v525, 0.0
  %v708 = vmax.f32 %v530, 0.0
  %v709 = vmax.f32 %v535, 0.0
  %v710 = vmax.f32 %v540, 0.0
  %v711 = vmax.f32 %v545, 0.0
  %v712 = vmax.f32 %v550, 0.0
  %v713 = vmax.f32 %v555, 0.0
  %v714 = vmax.f32 %v560, 0.0
  %v715 = vmax.f32 %v565, 0.0
  %v716 = vmax.f32 %v570, 0.0
  %v717 = vmax.f32 %v575, 0.0
  %v718 = vmax.f32 %v580, 0.0
  %v719 = vmax.f32 %v585, 0.0
  %v720 = vmax.f32 %v590, 0.0
  %v721 = vmax.f32 %v595, 0.0
  %v722 = vmax.f32 %v600, 0.0
  %v723 = vmax.f32 %v605, 0.0
  %v724 = vmax.f32 %v610, 0.0
  %v725 = vmax.f32 %v615, 0.0
  %v726 = vmax.f32 %v620, 0.0
  %v727 = vmax.f32 %v625, 0.0
  %v728 = vmax.f32 %v630, 0.0
  %v729 = vmax.f32 %v635, 0.0
  %v730 = vmax.f32 %v640, 0.0
  %v731 = vmax.f32 %v645, 0.0
  %v732 = vmax.f32 %v650, 0.0
  %v733 = vmax.f32 %v655, 0.0
  %v734 = vmax.f32 %v660, 0.0
  %v735 = vmax.f32 %v665, 0.0
  %v736 = vmax.f32 %v670, 0.0
  %v737 = vld [vmem:[%s3] sm:$0xff]
  %v738 = vld [vmem:[%s3 + $0x8] sm:$0xff]
  %v739 = vld [vmem:[%s3 + $0x10] sm:$0xff]
  %v740 = vld [vmem:[%s3 + $0x18] sm:$0xff]
  %v741 = vld [vmem:[%s3 + $0x20] sm:$0xff]
  %v742 = vld [vmem:[%s3 + $0x28] sm:$0xff]
  %v743 = vld [vmem:[%s3 + $0x30] sm:$0xff]
  %v744 = vld [vmem:[%s3 + $0x38] sm:$0xff]
  %v745 = vld [vmem:[%s4] sm:$0x1]
  %v747 = vlaneseq
  %v748 = vshrl.u32 %v747, 7
  %v749 = vsub.s32 0, %v748
  %v750 = vrot.slane %v745, %v749
  %vm752 = vcmask 523264
  %v754 = vsel %vm752, %v673, 0
  %v757 = vsel %vm752, %v674, 0
  %v760 = vsel %vm752, %v675, 0
  %v763 = vsel %vm752, %v676, 0
  %v766 = vsel %vm752, %v677, 0
  %v769 = vsel %vm752, %v678, 0
  %v772 = vsel %vm752, %v679, 0
  %v775 = vsel %vm752, %v680, 0
  %v778 = vsel %vm752, %v681, 0
  %v781 = vsel %vm752, %v682, 0
  %v784 = vsel %vm752, %v683, 0
  %v787 = vsel %vm752, %v684, 0
  %v790 = vsel %vm752, %v685, 0
  %v793 = vsel %vm752, %v686, 0
  %v796 = vsel %vm752, %v687, 0
  %v799 = vsel %vm752, %v688, 0
  %v802 = vsel %vm752, %v689, 0
  %v805 = vsel %vm752, %v690, 0
  %v808 = vsel %vm752, %v691, 0
  %v811 = vsel %vm752, %v692, 0
  %v814 = vsel %vm752, %v693, 0
  %v817 = vsel %vm752, %v694, 0
  %v820 = vsel %vm752, %v695, 0
  %v823 = vsel %vm752, %v696, 0
  %v826 = vsel %vm752, %v697, 0
  %v829 = vsel %vm752, %v698, 0
  %v832 = vsel %vm752, %v699, 0
  %v835 = vsel %vm752, %v700, 0
  %v838 = vsel %vm752, %v701, 0
  %v841 = vsel %vm752, %v702, 0
  %v844 = vsel %vm752, %v703, 0
  %v847 = vsel %vm752, %v704, 0
  %v850 = vsel %vm752, %v705, 0
  %v853 = vsel %vm752, %v706, 0
  %v856 = vsel %vm752, %v707, 0
  %v859 = vsel %vm752, %v708, 0
  %v862 = vsel %vm752, %v709, 0
  %v865 = vsel %vm752, %v710, 0
  %v868 = vsel %vm752, %v711, 0
  %v871 = vsel %vm752, %v712, 0
  %v874 = vsel %vm752, %v713, 0
  %v877 = vsel %vm752, %v714, 0
  %v880 = vsel %vm752, %v715, 0
  %v883 = vsel %vm752, %v716, 0
  %v886 = vsel %vm752, %v717, 0
  %v889 = vsel %vm752, %v718, 0
  %v892 = vsel %vm752, %v719, 0
  %v895 = vsel %vm752, %v720, 0
  %v898 = vsel %vm752, %v721, 0
  %v901 = vsel %vm752, %v722, 0
  %v904 = vsel %vm752, %v723, 0
  %v907 = vsel %vm752, %v724, 0
  %v910 = vsel %vm752, %v725, 0
  %v913 = vsel %vm752, %v726, 0
  %v916 = vsel %vm752, %v727, 0
  %v919 = vsel %vm752, %v728, 0
  %v922 = vsel %vm752, %v729, 0
  %v925 = vsel %vm752, %v730, 0
  %v928 = vsel %vm752, %v731, 0
  %v931 = vsel %vm752, %v732, 0
  %v934 = vsel %vm752, %v733, 0
  %v937 = vsel %vm752, %v734, 0
  %v940 = vsel %vm752, %v735, 0
  %v943 = vsel %vm752, %v736, 0
  %945 = vmatprep.subr.mxu0 0.0
  %946 = vmatpush1.msra.mxu0 0.0
  %947 = vmatprep.subr.mxu0 0.0
  %948 = vmatpush1.msra.mxu0 0.0
  %949 = vmatprep.subr.mxu0 0.0
  %950 = vmatpush1.msra.mxu0 0.0
  %951 = vmatprep.subr.mxu0 0.0
  %952 = vmatpush1.msra.mxu0 0.0
  %953 = vmatprep.subr.mxu0 0.0
  %954 = vmatpush1.msra.mxu0 0.0
  %955 = vmatprep.subr.mxu0 0.0
  %956 = vmatpush1.msra.mxu0 0.0
  %957 = vmatprep.subr.mxu0 0.0
  %958 = vmatpush1.msra.mxu0 0.0
  %959 = vmatprep.subr.mxu0 0.0
  %960 = vmatpush1.msra.mxu0 0.0
  %961 = vmatprep.subr.mxu0 0.0
  %962 = vmatpush1.msra.mxu0 %v744
  %963 = vmatprep.subr.mxu0 0.0
  %964 = vmatpush1.msra.mxu0 %v743
  %965 = vmatprep.subr.mxu0 0.0
  %966 = vmatpush1.msra.mxu0 %v742
  %967 = vmatprep.subr.mxu0 0.0
  %968 = vmatpush1.msra.mxu0 %v741
  %969 = vmatprep.subr.mxu0 0.0
  %970 = vmatpush1.msra.mxu0 %v740
  %971 = vmatprep.subr.mxu0 0.0
  %972 = vmatpush1.msra.mxu0 %v739
  %973 = vmatprep.subr.mxu0 0.0
  %974 = vmatpush1.msra.mxu0 %v738
  %975 = vmatprep.subr.mxu0 0.0
  %976 = vmatpush1.msra.mxu0 %v737
  %977 = vmatprep.subr.mxu0 0.0
  %978 = vmatpush2.msra.mxu0 0.0
  %979 = vmatprep.subr.mxu0 0.0
  %980 = vmatpush2.msra.mxu0 0.0
  %981 = vmatprep.subr.mxu0 0.0
  %982 = vmatpush2.msra.mxu0 0.0
  %983 = vmatprep.subr.mxu0 0.0
  %984 = vmatpush2.msra.mxu0 0.0
  %985 = vmatprep.subr.mxu0 0.0
  %986 = vmatpush2.msra.mxu0 0.0
  %987 = vmatprep.subr.mxu0 0.0
  %988 = vmatpush2.msra.mxu0 0.0
  %989 = vmatprep.subr.mxu0 0.0
  %990 = vmatpush2.msra.mxu0 0.0
  %991 = vmatprep.subr.mxu0 0.0
  %992 = vmatpush2.msra.mxu0 0.0
  %993 = vmatprep.subr.mxu0 0.0
  %994 = vmatpush2.msra.mxu0 0.0
  %995 = vmatprep.subr.mxu0 0.0
  %996 = vmatpush2.msra.mxu0 0.0
  %997 = vmatprep.subr.mxu0 0.0
  %998 = vmatpush2.msra.mxu0 0.0
  %999 = vmatprep.subr.mxu0 0.0
  %1000 = vmatpush2.msra.mxu0 0.0
  %1001 = vmatprep.subr.mxu0 0.0
  %1002 = vmatpush2.msra.mxu0 0.0
  %1003 = vmatprep.subr.mxu0 0.0
  %1004 = vmatpush2.msra.mxu0 0.0
  %1005 = vmatprep.subr.mxu0 0.0
  %1006 = vmatpush2.msra.mxu0 0.0
  %1007 = vmatprep.subr.mxu0 0.0
  %1008 = vmatpush2.msra.mxu0 0.0
  %1009 = vmatprep.mubr.f32.mxu0 0.0
  %1010 = vmatmul.mubr.f32.gmra.mxu0 %v754
  %v1011 = vpop.f32.mrf.mxu0
  %v1012 = vadd.f32 %v750, %v1011
  %v1013 = vpop.f32.mrf.mxu0
  %1014 = vmatprep.mubr.f32.mxu0 0.0
  %1015 = vmatmul.mubr.f32.gmra.mxu0 %v757
  %v1016 = vpop.f32.mrf.mxu0
  %v1017 = vadd.f32 %v750, %v1016
  %v1018 = vpop.f32.mrf.mxu0
  %1019 = vmatprep.mubr.f32.mxu0 0.0
  %1020 = vmatmul.mubr.f32.gmra.mxu0 %v760
  %v1021 = vpop.f32.mrf.mxu0
  %v1022 = vadd.f32 %v750, %v1021
  %v1023 = vpop.f32.mrf.mxu0
  %1024 = vmatprep.mubr.f32.mxu0 0.0
  %1025 = vmatmul.mubr.f32.gmra.mxu0 %v763
  %v1026 = vpop.f32.mrf.mxu0
  %v1027 = vadd.f32 %v750, %v1026
  %v1028 = vpop.f32.mrf.mxu0
  %1029 = vmatprep.mubr.f32.mxu0 0.0
  %1030 = vmatmul.mubr.f32.gmra.mxu0 %v766
  %v1031 = vpop.f32.mrf.mxu0
  %v1032 = vadd.f32 %v750, %v1031
  %v1033 = vpop.f32.mrf.mxu0
  %1034 = vmatprep.mubr.f32.mxu0 0.0
  %1035 = vmatmul.mubr.f32.gmra.mxu0 %v769
  %v1036 = vpop.f32.mrf.mxu0
  %v1037 = vadd.f32 %v750, %v1036
  %v1038 = vpop.f32.mrf.mxu0
  %1039 = vmatprep.mubr.f32.mxu0 0.0
  %1040 = vmatmul.mubr.f32.gmra.mxu0 %v772
  %v1041 = vpop.f32.mrf.mxu0
  %v1042 = vadd.f32 %v750, %v1041
  %v1043 = vpop.f32.mrf.mxu0
  %1044 = vmatprep.mubr.f32.mxu0 0.0
  %1045 = vmatmul.mubr.f32.gmra.mxu0 %v775
  %v1046 = vpop.f32.mrf.mxu0
  %v1047 = vadd.f32 %v750, %v1046
  %v1048 = vpop.f32.mrf.mxu0
  %1049 = vmatprep.mubr.f32.mxu0 0.0
  %1050 = vmatmul.mubr.f32.gmra.mxu0 %v778
  %v1051 = vpop.f32.mrf.mxu0
  %v1052 = vadd.f32 %v750, %v1051
  %v1053 = vpop.f32.mrf.mxu0
  %1054 = vmatprep.mubr.f32.mxu0 0.0
  %1055 = vmatmul.mubr.f32.gmra.mxu0 %v781
  %v1056 = vpop.f32.mrf.mxu0
  %v1057 = vadd.f32 %v750, %v1056
  %v1058 = vpop.f32.mrf.mxu0
  %1059 = vmatprep.mubr.f32.mxu0 0.0
  %1060 = vmatmul.mubr.f32.gmra.mxu0 %v784
  %v1061 = vpop.f32.mrf.mxu0
  %v1062 = vadd.f32 %v750, %v1061
  %v1063 = vpop.f32.mrf.mxu0
  %1064 = vmatprep.mubr.f32.mxu0 0.0
  %1065 = vmatmul.mubr.f32.gmra.mxu0 %v787
  %v1066 = vpop.f32.mrf.mxu0
  %v1067 = vadd.f32 %v750, %v1066
  %v1068 = vpop.f32.mrf.mxu0
  %1069 = vmatprep.mubr.f32.mxu0 0.0
  %1070 = vmatmul.mubr.f32.gmra.mxu0 %v790
  %v1071 = vpop.f32.mrf.mxu0
  %v1072 = vadd.f32 %v750, %v1071
  %v1073 = vpop.f32.mrf.mxu0
  %1074 = vmatprep.mubr.f32.mxu0 0.0
  %1075 = vmatmul.mubr.f32.gmra.mxu0 %v793
  %v1076 = vpop.f32.mrf.mxu0
  %v1077 = vadd.f32 %v750, %v1076
  %v1078 = vpop.f32.mrf.mxu0
  %1079 = vmatprep.mubr.f32.mxu0 0.0
  %1080 = vmatmul.mubr.f32.gmra.mxu0 %v796
  %v1081 = vpop.f32.mrf.mxu0
  %v1082 = vadd.f32 %v750, %v1081
  %v1083 = vpop.f32.mrf.mxu0
  %1084 = vmatprep.mubr.f32.mxu0 0.0
  %1085 = vmatmul.mubr.f32.gmra.mxu0 %v799
  %v1086 = vpop.f32.mrf.mxu0
  %v1087 = vadd.f32 %v750, %v1086
  %v1088 = vpop.f32.mrf.mxu0
  %1089 = vmatprep.mubr.f32.mxu0 0.0
  %1090 = vmatmul.mubr.f32.gmra.mxu0 %v802
  %v1091 = vpop.f32.mrf.mxu0
  %v1092 = vadd.f32 %v750, %v1091
  %v1093 = vpop.f32.mrf.mxu0
  %1094 = vmatprep.mubr.f32.mxu0 0.0
  %1095 = vmatmul.mubr.f32.gmra.mxu0 %v805
  %v1096 = vpop.f32.mrf.mxu0
  %v1097 = vadd.f32 %v750, %v1096
  %v1098 = vpop.f32.mrf.mxu0
  %1099 = vmatprep.mubr.f32.mxu0 0.0
  %1100 = vmatmul.mubr.f32.gmra.mxu0 %v808
  %v1101 = vpop.f32.mrf.mxu0
  %v1102 = vadd.f32 %v750, %v1101
  %v1103 = vpop.f32.mrf.mxu0
  %1104 = vmatprep.mubr.f32.mxu0 0.0
  %1105 = vmatmul.mubr.f32.gmra.mxu0 %v811
  %v1106 = vpop.f32.mrf.mxu0
  %v1107 = vadd.f32 %v750, %v1106
  %v1108 = vpop.f32.mrf.mxu0
  %1109 = vmatprep.mubr.f32.mxu0 0.0
  %1110 = vmatmul.mubr.f32.gmra.mxu0 %v814
  %v1111 = vpop.f32.mrf.mxu0
  %v1112 = vadd.f32 %v750, %v1111
  %v1113 = vpop.f32.mrf.mxu0
  %1114 = vmatprep.mubr.f32.mxu0 0.0
  %1115 = vmatmul.mubr.f32.gmra.mxu0 %v817
  %v1116 = vpop.f32.mrf.mxu0
  %v1117 = vadd.f32 %v750, %v1116
  %v1118 = vpop.f32.mrf.mxu0
  %1119 = vmatprep.mubr.f32.mxu0 0.0
  %1120 = vmatmul.mubr.f32.gmra.mxu0 %v820
  %v1121 = vpop.f32.mrf.mxu0
  %v1122 = vadd.f32 %v750, %v1121
  %v1123 = vpop.f32.mrf.mxu0
  %1124 = vmatprep.mubr.f32.mxu0 0.0
  %1125 = vmatmul.mubr.f32.gmra.mxu0 %v823
  %v1126 = vpop.f32.mrf.mxu0
  %v1127 = vadd.f32 %v750, %v1126
  %v1128 = vpop.f32.mrf.mxu0
  %1129 = vmatprep.mubr.f32.mxu0 0.0
  %1130 = vmatmul.mubr.f32.gmra.mxu0 %v826
  %v1131 = vpop.f32.mrf.mxu0
  %v1132 = vadd.f32 %v750, %v1131
  %v1133 = vpop.f32.mrf.mxu0
  %1134 = vmatprep.mubr.f32.mxu0 0.0
  %1135 = vmatmul.mubr.f32.gmra.mxu0 %v829
  %v1136 = vpop.f32.mrf.mxu0
  %v1137 = vadd.f32 %v750, %v1136
  %v1138 = vpop.f32.mrf.mxu0
  %1139 = vmatprep.mubr.f32.mxu0 0.0
  %1140 = vmatmul.mubr.f32.gmra.mxu0 %v832
  %v1141 = vpop.f32.mrf.mxu0
  %v1142 = vadd.f32 %v750, %v1141
  %v1143 = vpop.f32.mrf.mxu0
  %1144 = vmatprep.mubr.f32.mxu0 0.0
  %1145 = vmatmul.mubr.f32.gmra.mxu0 %v835
  %v1146 = vpop.f32.mrf.mxu0
  %v1147 = vadd.f32 %v750, %v1146
  %v1148 = vpop.f32.mrf.mxu0
  %1149 = vmatprep.mubr.f32.mxu0 0.0
  %1150 = vmatmul.mubr.f32.gmra.mxu0 %v838
  %v1151 = vpop.f32.mrf.mxu0
  %v1152 = vadd.f32 %v750, %v1151
  %v1153 = vpop.f32.mrf.mxu0
  %1154 = vmatprep.mubr.f32.mxu0 0.0
  %1155 = vmatmul.mubr.f32.gmra.mxu0 %v841
  %v1156 = vpop.f32.mrf.mxu0
  %v1157 = vadd.f32 %v750, %v1156
  %v1158 = vpop.f32.mrf.mxu0
  %1159 = vmatprep.mubr.f32.mxu0 0.0
  %1160 = vmatmul.mubr.f32.gmra.mxu0 %v844
  %v1161 = vpop.f32.mrf.mxu0
  %v1162 = vadd.f32 %v750, %v1161
  %v1163 = vpop.f32.mrf.mxu0
  %1164 = vmatprep.mubr.f32.mxu0 0.0
  %1165 = vmatmul.mubr.f32.gmra.mxu0 %v847
  %v1166 = vpop.f32.mrf.mxu0
  %v1167 = vadd.f32 %v750, %v1166
  %v1168 = vpop.f32.mrf.mxu0
  %1169 = vmatprep.mubr.f32.mxu0 0.0
  %1170 = vmatmul.mubr.f32.gmra.mxu0 %v850
  %v1171 = vpop.f32.mrf.mxu0
  %v1172 = vadd.f32 %v750, %v1171
  %v1173 = vpop.f32.mrf.mxu0
  %1174 = vmatprep.mubr.f32.mxu0 0.0
  %1175 = vmatmul.mubr.f32.gmra.mxu0 %v853
  %v1176 = vpop.f32.mrf.mxu0
  %v1177 = vadd.f32 %v750, %v1176
  %v1178 = vpop.f32.mrf.mxu0
  %1179 = vmatprep.mubr.f32.mxu0 0.0
  %1180 = vmatmul.mubr.f32.gmra.mxu0 %v856
  %v1181 = vpop.f32.mrf.mxu0
  %v1182 = vadd.f32 %v750, %v1181
  %v1183 = vpop.f32.mrf.mxu0
  %1184 = vmatprep.mubr.f32.mxu0 0.0
  %1185 = vmatmul.mubr.f32.gmra.mxu0 %v859
  %v1186 = vpop.f32.mrf.mxu0
  %v1187 = vadd.f32 %v750, %v1186
  %v1188 = vpop.f32.mrf.mxu0
  %1189 = vmatprep.mubr.f32.mxu0 0.0
  %1190 = vmatmul.mubr.f32.gmra.mxu0 %v862
  %v1191 = vpop.f32.mrf.mxu0
  %v1192 = vadd.f32 %v750, %v1191
  %v1193 = vpop.f32.mrf.mxu0
  %1194 = vmatprep.mubr.f32.mxu0 0.0
  %1195 = vmatmul.mubr.f32.gmra.mxu0 %v865
  %v1196 = vpop.f32.mrf.mxu0
  %v1197 = vadd.f32 %v750, %v1196
  %v1198 = vpop.f32.mrf.mxu0
  %1199 = vmatprep.mubr.f32.mxu0 0.0
  %1200 = vmatmul.mubr.f32.gmra.mxu0 %v868
  %v1201 = vpop.f32.mrf.mxu0
  %v1202 = vadd.f32 %v750, %v1201
  %v1203 = vpop.f32.mrf.mxu0
  %1204 = vmatprep.mubr.f32.mxu0 0.0
  %1205 = vmatmul.mubr.f32.gmra.mxu0 %v871
  %v1206 = vpop.f32.mrf.mxu0
  %v1207 = vadd.f32 %v750, %v1206
  %v1208 = vpop.f32.mrf.mxu0
  %1209 = vmatprep.mubr.f32.mxu0 0.0
  %1210 = vmatmul.mubr.f32.gmra.mxu0 %v874
  %v1211 = vpop.f32.mrf.mxu0
  %v1212 = vadd.f32 %v750, %v1211
  %v1213 = vpop.f32.mrf.mxu0
  %1214 = vmatprep.mubr.f32.mxu0 0.0
  %1215 = vmatmul.mubr.f32.gmra.mxu0 %v877
  %v1216 = vpop.f32.mrf.mxu0
  %v1217 = vadd.f32 %v750, %v1216
  %v1218 = vpop.f32.mrf.mxu0
  %1219 = vmatprep.mubr.f32.mxu0 0.0
  %1220 = vmatmul.mubr.f32.gmra.mxu0 %v880
  %v1221 = vpop.f32.mrf.mxu0
  %v1222 = vadd.f32 %v750, %v1221
  %v1223 = vpop.f32.mrf.mxu0
  %1224 = vmatprep.mubr.f32.mxu0 0.0
  %1225 = vmatmul.mubr.f32.gmra.mxu0 %v883
  %v1226 = vpop.f32.mrf.mxu0
  %v1227 = vadd.f32 %v750, %v1226
  %v1228 = vpop.f32.mrf.mxu0
  %1229 = vmatprep.mubr.f32.mxu0 0.0
  %1230 = vmatmul.mubr.f32.gmra.mxu0 %v886
  %v1231 = vpop.f32.mrf.mxu0
  %v1232 = vadd.f32 %v750, %v1231
  %v1233 = vpop.f32.mrf.mxu0
  %1234 = vmatprep.mubr.f32.mxu0 0.0
  %1235 = vmatmul.mubr.f32.gmra.mxu0 %v889
  %v1236 = vpop.f32.mrf.mxu0
  %v1237 = vadd.f32 %v750, %v1236
  %v1238 = vpop.f32.mrf.mxu0
  %1239 = vmatprep.mubr.f32.mxu0 0.0
  %1240 = vmatmul.mubr.f32.gmra.mxu0 %v892
  %v1241 = vpop.f32.mrf.mxu0
  %v1242 = vadd.f32 %v750, %v1241
  %v1243 = vpop.f32.mrf.mxu0
  %1244 = vmatprep.mubr.f32.mxu0 0.0
  %1245 = vmatmul.mubr.f32.gmra.mxu0 %v895
  %v1246 = vpop.f32.mrf.mxu0
  %v1247 = vadd.f32 %v750, %v1246
  %v1248 = vpop.f32.mrf.mxu0
  %1249 = vmatprep.mubr.f32.mxu0 0.0
  %1250 = vmatmul.mubr.f32.gmra.mxu0 %v898
  %v1251 = vpop.f32.mrf.mxu0
  %v1252 = vadd.f32 %v750, %v1251
  %v1253 = vpop.f32.mrf.mxu0
  %1254 = vmatprep.mubr.f32.mxu0 0.0
  %1255 = vmatmul.mubr.f32.gmra.mxu0 %v901
  %v1256 = vpop.f32.mrf.mxu0
  %v1257 = vadd.f32 %v750, %v1256
  %v1258 = vpop.f32.mrf.mxu0
  %1259 = vmatprep.mubr.f32.mxu0 0.0
  %1260 = vmatmul.mubr.f32.gmra.mxu0 %v904
  %v1261 = vpop.f32.mrf.mxu0
  %v1262 = vadd.f32 %v750, %v1261
  %v1263 = vpop.f32.mrf.mxu0
  %1264 = vmatprep.mubr.f32.mxu0 0.0
  %1265 = vmatmul.mubr.f32.gmra.mxu0 %v907
  %v1266 = vpop.f32.mrf.mxu0
  %v1267 = vadd.f32 %v750, %v1266
  %v1268 = vpop.f32.mrf.mxu0
  %1269 = vmatprep.mubr.f32.mxu0 0.0
  %1270 = vmatmul.mubr.f32.gmra.mxu0 %v910
  %v1271 = vpop.f32.mrf.mxu0
  %v1272 = vadd.f32 %v750, %v1271
  %v1273 = vpop.f32.mrf.mxu0
  %1274 = vmatprep.mubr.f32.mxu0 0.0
  %1275 = vmatmul.mubr.f32.gmra.mxu0 %v913
  %v1276 = vpop.f32.mrf.mxu0
  %v1277 = vadd.f32 %v750, %v1276
  %v1278 = vpop.f32.mrf.mxu0
  %1279 = vmatprep.mubr.f32.mxu0 0.0
  %1280 = vmatmul.mubr.f32.gmra.mxu0 %v916
  %v1281 = vpop.f32.mrf.mxu0
  %v1282 = vadd.f32 %v750, %v1281
  %v1283 = vpop.f32.mrf.mxu0
  %1284 = vmatprep.mubr.f32.mxu0 0.0
  %1285 = vmatmul.mubr.f32.gmra.mxu0 %v919
  %v1286 = vpop.f32.mrf.mxu0
  %v1287 = vadd.f32 %v750, %v1286
  %v1288 = vpop.f32.mrf.mxu0
  %1289 = vmatprep.mubr.f32.mxu0 0.0
  %1290 = vmatmul.mubr.f32.gmra.mxu0 %v922
  %v1291 = vpop.f32.mrf.mxu0
  %v1292 = vadd.f32 %v750, %v1291
  %v1293 = vpop.f32.mrf.mxu0
  %1294 = vmatprep.mubr.f32.mxu0 0.0
  %1295 = vmatmul.mubr.f32.gmra.mxu0 %v925
  %v1296 = vpop.f32.mrf.mxu0
  %v1297 = vadd.f32 %v750, %v1296
  %v1298 = vpop.f32.mrf.mxu0
  %1299 = vmatprep.mubr.f32.mxu0 0.0
  %1300 = vmatmul.mubr.f32.gmra.mxu0 %v928
  %v1301 = vpop.f32.mrf.mxu0
  %v1302 = vadd.f32 %v750, %v1301
  %v1303 = vpop.f32.mrf.mxu0
  %1304 = vmatprep.mubr.f32.mxu0 0.0
  %1305 = vmatmul.mubr.f32.gmra.mxu0 %v931
  %v1306 = vpop.f32.mrf.mxu0
  %v1307 = vadd.f32 %v750, %v1306
  %v1308 = vpop.f32.mrf.mxu0
  %1309 = vmatprep.mubr.f32.mxu0 0.0
  %1310 = vmatmul.mubr.f32.gmra.mxu0 %v934
  %v1311 = vpop.f32.mrf.mxu0
  %v1312 = vadd.f32 %v750, %v1311
  %v1313 = vpop.f32.mrf.mxu0
  %1314 = vmatprep.mubr.f32.mxu0 0.0
  %1315 = vmatmul.mubr.f32.gmra.mxu0 %v937
  %v1316 = vpop.f32.mrf.mxu0
  %v1317 = vadd.f32 %v750, %v1316
  %v1318 = vpop.f32.mrf.mxu0
  %1319 = vmatprep.mubr.f32.mxu0 0.0
  %1320 = vmatmul.mubr.f32.gmra.mxu0 %v940
  %v1321 = vpop.f32.mrf.mxu0
  %v1322 = vadd.f32 %v750, %v1321
  %v1323 = vpop.f32.mrf.mxu0
  %1324 = vmatprep.mubr.f32.mxu0 0.0
  %1325 = vmatmul.mubr.f32.gmra.mxu0 %v943
  %v1326 = vpop.f32.mrf.mxu0
  %v1327 = vadd.f32 %v750, %v1326
  %v1328 = vpop.f32.mrf.mxu0
  %1329 = vdwg.mxu0
  %v1330 = vlaneseq
  %v1331 = vand.u32 %v1330, 127
  %vm1332 = vcmp.lt.s32.totalorder %v1331, 2
  %vm1333 = vcmp.ge.s32.totalorder %v1331, 2
  %vm1334 = vcmp.lt.s32.totalorder %v1331, 6
  %vm1335 = vmand %vm1333, %vm1334
  %v1336 = vsel %vm1335, %v1012, -1e+30
  %v1337 = vsel %vm1335, %v1017, -1e+30
  %v1338 = vsel %vm1335, %v1022, -1e+30
  %v1339 = vsel %vm1335, %v1027, -1e+30
  %v1340 = vsel %vm1335, %v1032, -1e+30
  %v1341 = vsel %vm1335, %v1037, -1e+30
  %v1342 = vsel %vm1335, %v1042, -1e+30
  %v1343 = vsel %vm1335, %v1047, -1e+30
  %v1344 = vsel %vm1335, %v1052, -1e+30
  %v1345 = vsel %vm1335, %v1057, -1e+30
  %v1346 = vsel %vm1335, %v1062, -1e+30
  %v1347 = vsel %vm1335, %v1067, -1e+30
  %v1348 = vsel %vm1335, %v1072, -1e+30
  %v1349 = vsel %vm1335, %v1077, -1e+30
  %v1350 = vsel %vm1335, %v1082, -1e+30
  %v1351 = vsel %vm1335, %v1087, -1e+30
  %v1352 = vsel %vm1335, %v1092, -1e+30
  %v1353 = vsel %vm1335, %v1097, -1e+30
  %v1354 = vsel %vm1335, %v1102, -1e+30
  %v1355 = vsel %vm1335, %v1107, -1e+30
  %v1356 = vsel %vm1335, %v1112, -1e+30
  %v1357 = vsel %vm1335, %v1117, -1e+30
  %v1358 = vsel %vm1335, %v1122, -1e+30
  %v1359 = vsel %vm1335, %v1127, -1e+30
  %v1360 = vsel %vm1335, %v1132, -1e+30
  %v1361 = vsel %vm1335, %v1137, -1e+30
  %v1362 = vsel %vm1335, %v1142, -1e+30
  %v1363 = vsel %vm1335, %v1147, -1e+30
  %v1364 = vsel %vm1335, %v1152, -1e+30
  %v1365 = vsel %vm1335, %v1157, -1e+30
  %v1366 = vsel %vm1335, %v1162, -1e+30
  %v1367 = vsel %vm1335, %v1167, -1e+30
  %v1368 = vsel %vm1335, %v1172, -1e+30
  %v1369 = vsel %vm1335, %v1177, -1e+30
  %v1370 = vsel %vm1335, %v1182, -1e+30
  %v1371 = vsel %vm1335, %v1187, -1e+30
  %v1372 = vsel %vm1335, %v1192, -1e+30
  %v1373 = vsel %vm1335, %v1197, -1e+30
  %v1374 = vsel %vm1335, %v1202, -1e+30
  %v1375 = vsel %vm1335, %v1207, -1e+30
  %v1376 = vsel %vm1335, %v1212, -1e+30
  %v1377 = vsel %vm1335, %v1217, -1e+30
  %v1378 = vsel %vm1335, %v1222, -1e+30
  %v1379 = vsel %vm1335, %v1227, -1e+30
  %v1380 = vsel %vm1335, %v1232, -1e+30
  %v1381 = vsel %vm1335, %v1237, -1e+30
  %v1382 = vsel %vm1335, %v1242, -1e+30
  %v1383 = vsel %vm1335, %v1247, -1e+30
  %v1384 = vsel %vm1335, %v1252, -1e+30
  %v1385 = vsel %vm1335, %v1257, -1e+30
  %v1386 = vsel %vm1335, %v1262, -1e+30
  %v1387 = vsel %vm1335, %v1267, -1e+30
  %v1388 = vsel %vm1335, %v1272, -1e+30
  %v1389 = vsel %vm1335, %v1277, -1e+30
  %v1390 = vsel %vm1335, %v1282, -1e+30
  %v1391 = vsel %vm1335, %v1287, -1e+30
  %v1392 = vsel %vm1335, %v1292, -1e+30
  %v1393 = vsel %vm1335, %v1297, -1e+30
  %v1394 = vsel %vm1335, %v1302, -1e+30
  %v1395 = vsel %vm1335, %v1307, -1e+30
  %v1396 = vsel %vm1335, %v1312, -1e+30
  %v1397 = vsel %vm1335, %v1317, -1e+30
  %v1398 = vsel %vm1335, %v1322, -1e+30
  %v1399 = vsel %vm1335, %v1327, -1e+30
  %1400 = vmax.xlane.f32.xlu0 %v1336
  %v1401 = vpop.xlane.xlu0 %1400
  %1402 = vmax.xlane.f32.xlu0 %v1337
  %v1403 = vpop.xlane.xlu0 %1402
  %1404 = vmax.xlane.f32.xlu0 %v1338
  %v1405 = vpop.xlane.xlu0 %1404
  %1406 = vmax.xlane.f32.xlu0 %v1339
  %v1407 = vpop.xlane.xlu0 %1406
  %1408 = vmax.xlane.f32.xlu0 %v1340
  %v1409 = vpop.xlane.xlu0 %1408
  %1410 = vmax.xlane.f32.xlu0 %v1341
  %v1411 = vpop.xlane.xlu0 %1410
  %1412 = vmax.xlane.f32.xlu0 %v1342
  %v1413 = vpop.xlane.xlu0 %1412
  %1414 = vmax.xlane.f32.xlu0 %v1343
  %v1415 = vpop.xlane.xlu0 %1414
  %1416 = vmax.xlane.f32.xlu0 %v1344
  %v1417 = vpop.xlane.xlu0 %1416
  %1418 = vmax.xlane.f32.xlu0 %v1345
  %v1419 = vpop.xlane.xlu0 %1418
  %1420 = vmax.xlane.f32.xlu0 %v1346
  %v1421 = vpop.xlane.xlu0 %1420
  %1422 = vmax.xlane.f32.xlu0 %v1347
  %v1423 = vpop.xlane.xlu0 %1422
  %1424 = vmax.xlane.f32.xlu0 %v1348
  %v1425 = vpop.xlane.xlu0 %1424
  %1426 = vmax.xlane.f32.xlu0 %v1349
  %v1427 = vpop.xlane.xlu0 %1426
  %1428 = vmax.xlane.f32.xlu0 %v1350
  %v1429 = vpop.xlane.xlu0 %1428
  %1430 = vmax.xlane.f32.xlu0 %v1351
  %v1431 = vpop.xlane.xlu0 %1430
  %1432 = vmax.xlane.f32.xlu0 %v1352
  %v1433 = vpop.xlane.xlu0 %1432
  %1434 = vmax.xlane.f32.xlu0 %v1353
  %v1435 = vpop.xlane.xlu0 %1434
  %1436 = vmax.xlane.f32.xlu0 %v1354
  %v1437 = vpop.xlane.xlu0 %1436
  %1438 = vmax.xlane.f32.xlu0 %v1355
  %v1439 = vpop.xlane.xlu0 %1438
  %1440 = vmax.xlane.f32.xlu0 %v1356
  %v1441 = vpop.xlane.xlu0 %1440
  %1442 = vmax.xlane.f32.xlu0 %v1357
  %v1443 = vpop.xlane.xlu0 %1442
  %1444 = vmax.xlane.f32.xlu0 %v1358
  %v1445 = vpop.xlane.xlu0 %1444
  %1446 = vmax.xlane.f32.xlu0 %v1359
  %v1447 = vpop.xlane.xlu0 %1446
  %1448 = vmax.xlane.f32.xlu0 %v1360
  %v1449 = vpop.xlane.xlu0 %1448
  %1450 = vmax.xlane.f32.xlu0 %v1361
  %v1451 = vpop.xlane.xlu0 %1450
  %1452 = vmax.xlane.f32.xlu0 %v1362
  %v1453 = vpop.xlane.xlu0 %1452
  %1454 = vmax.xlane.f32.xlu0 %v1363
  %v1455 = vpop.xlane.xlu0 %1454
  %1456 = vmax.xlane.f32.xlu0 %v1364
  %v1457 = vpop.xlane.xlu0 %1456
  %1458 = vmax.xlane.f32.xlu0 %v1365
  %v1459 = vpop.xlane.xlu0 %1458
  %1460 = vmax.xlane.f32.xlu0 %v1366
  %v1461 = vpop.xlane.xlu0 %1460
  %1462 = vmax.xlane.f32.xlu0 %v1367
  %v1463 = vpop.xlane.xlu0 %1462
  %1464 = vmax.xlane.f32.xlu0 %v1368
  %v1465 = vpop.xlane.xlu0 %1464
  %1466 = vmax.xlane.f32.xlu0 %v1369
  %v1467 = vpop.xlane.xlu0 %1466
  %1468 = vmax.xlane.f32.xlu0 %v1370
  %v1469 = vpop.xlane.xlu0 %1468
  %1470 = vmax.xlane.f32.xlu0 %v1371
  %v1471 = vpop.xlane.xlu0 %1470
  %1472 = vmax.xlane.f32.xlu0 %v1372
  %v1473 = vpop.xlane.xlu0 %1472
  %1474 = vmax.xlane.f32.xlu0 %v1373
  %v1475 = vpop.xlane.xlu0 %1474
  %1476 = vmax.xlane.f32.xlu0 %v1374
  %v1477 = vpop.xlane.xlu0 %1476
  %1478 = vmax.xlane.f32.xlu0 %v1375
  %v1479 = vpop.xlane.xlu0 %1478
  %1480 = vmax.xlane.f32.xlu0 %v1376
  %v1481 = vpop.xlane.xlu0 %1480
  %1482 = vmax.xlane.f32.xlu0 %v1377
  %v1483 = vpop.xlane.xlu0 %1482
  %1484 = vmax.xlane.f32.xlu0 %v1378
  %v1485 = vpop.xlane.xlu0 %1484
  %1486 = vmax.xlane.f32.xlu0 %v1379
  %v1487 = vpop.xlane.xlu0 %1486
  %1488 = vmax.xlane.f32.xlu0 %v1380
  %v1489 = vpop.xlane.xlu0 %1488
  %1490 = vmax.xlane.f32.xlu0 %v1381
  %v1491 = vpop.xlane.xlu0 %1490
  %1492 = vmax.xlane.f32.xlu0 %v1382
  %v1493 = vpop.xlane.xlu0 %1492
  %1494 = vmax.xlane.f32.xlu0 %v1383
  %v1495 = vpop.xlane.xlu0 %1494
  %1496 = vmax.xlane.f32.xlu0 %v1384
  %v1497 = vpop.xlane.xlu0 %1496
  %1498 = vmax.xlane.f32.xlu0 %v1385
  %v1499 = vpop.xlane.xlu0 %1498
  %1500 = vmax.xlane.f32.xlu0 %v1386
  %v1501 = vpop.xlane.xlu0 %1500
  %1502 = vmax.xlane.f32.xlu0 %v1387
  %v1503 = vpop.xlane.xlu0 %1502
  %1504 = vmax.xlane.f32.xlu0 %v1388
  %v1505 = vpop.xlane.xlu0 %1504
  %1506 = vmax.xlane.f32.xlu0 %v1389
  %v1507 = vpop.xlane.xlu0 %1506
  %1508 = vmax.xlane.f32.xlu0 %v1390
  %v1509 = vpop.xlane.xlu0 %1508
  %1510 = vmax.xlane.f32.xlu0 %v1391
  %v1511 = vpop.xlane.xlu0 %1510
  %1512 = vmax.xlane.f32.xlu0 %v1392
  %v1513 = vpop.xlane.xlu0 %1512
  %1514 = vmax.xlane.f32.xlu0 %v1393
  %v1515 = vpop.xlane.xlu0 %1514
  %1516 = vmax.xlane.f32.xlu0 %v1394
  %v1517 = vpop.xlane.xlu0 %1516
  %1518 = vmax.xlane.f32.xlu0 %v1395
  %v1519 = vpop.xlane.xlu0 %1518
  %1520 = vmax.xlane.f32.xlu0 %v1396
  %v1521 = vpop.xlane.xlu0 %1520
  %1522 = vmax.xlane.f32.xlu0 %v1397
  %v1523 = vpop.xlane.xlu0 %1522
  %1524 = vmax.xlane.f32.xlu0 %v1398
  %v1525 = vpop.xlane.xlu0 %1524
  %1526 = vmax.xlane.f32.xlu0 %v1399
  %v1527 = vpop.xlane.xlu0 %1526
  %v1528 = vsub.f32 0.0, %v1012
  %v1529 = vsub.f32 0.0, %v1017
  %v1530 = vsub.f32 0.0, %v1022
  %v1531 = vsub.f32 0.0, %v1027
  %v1532 = vsub.f32 0.0, %v1032
  %v1533 = vsub.f32 0.0, %v1037
  %v1534 = vsub.f32 0.0, %v1042
  %v1535 = vsub.f32 0.0, %v1047
  %v1536 = vsub.f32 0.0, %v1052
  %v1537 = vsub.f32 0.0, %v1057
  %v1538 = vsub.f32 0.0, %v1062
  %v1539 = vsub.f32 0.0, %v1067
  %v1540 = vsub.f32 0.0, %v1072
  %v1541 = vsub.f32 0.0, %v1077
  %v1542 = vsub.f32 0.0, %v1082
  %v1543 = vsub.f32 0.0, %v1087
  %v1544 = vsub.f32 0.0, %v1092
  %v1545 = vsub.f32 0.0, %v1097
  %v1546 = vsub.f32 0.0, %v1102
  %v1547 = vsub.f32 0.0, %v1107
  %v1548 = vsub.f32 0.0, %v1112
  %v1549 = vsub.f32 0.0, %v1117
  %v1550 = vsub.f32 0.0, %v1122
  %v1551 = vsub.f32 0.0, %v1127
  %v1552 = vsub.f32 0.0, %v1132
  %v1553 = vsub.f32 0.0, %v1137
  %v1554 = vsub.f32 0.0, %v1142
  %v1555 = vsub.f32 0.0, %v1147
  %v1556 = vsub.f32 0.0, %v1152
  %v1557 = vsub.f32 0.0, %v1157
  %v1558 = vsub.f32 0.0, %v1162
  %v1559 = vsub.f32 0.0, %v1167
  %v1560 = vsub.f32 0.0, %v1172
  %v1561 = vsub.f32 0.0, %v1177
  %v1562 = vsub.f32 0.0, %v1182
  %v1563 = vsub.f32 0.0, %v1187
  %v1564 = vsub.f32 0.0, %v1192
  %v1565 = vsub.f32 0.0, %v1197
  %v1566 = vsub.f32 0.0, %v1202
  %v1567 = vsub.f32 0.0, %v1207
  %v1568 = vsub.f32 0.0, %v1212
  %v1569 = vsub.f32 0.0, %v1217
  %v1570 = vsub.f32 0.0, %v1222
  %v1571 = vsub.f32 0.0, %v1227
  %v1572 = vsub.f32 0.0, %v1232
  %v1573 = vsub.f32 0.0, %v1237
  %v1574 = vsub.f32 0.0, %v1242
  %v1575 = vsub.f32 0.0, %v1247
  %v1576 = vsub.f32 0.0, %v1252
  %v1577 = vsub.f32 0.0, %v1257
  %v1578 = vsub.f32 0.0, %v1262
  %v1579 = vsub.f32 0.0, %v1267
  %v1580 = vsub.f32 0.0, %v1272
  %v1581 = vsub.f32 0.0, %v1277
  %v1582 = vsub.f32 0.0, %v1282
  %v1583 = vsub.f32 0.0, %v1287
  %v1584 = vsub.f32 0.0, %v1292
  %v1585 = vsub.f32 0.0, %v1297
  %v1586 = vsub.f32 0.0, %v1302
  %v1587 = vsub.f32 0.0, %v1307
  %v1588 = vsub.f32 0.0, %v1312
  %v1589 = vsub.f32 0.0, %v1317
  %v1590 = vsub.f32 0.0, %v1322
  %v1591 = vsub.f32 0.0, %v1327
  %v1592 = vsub.f32 %v1336, %v1401
  %v1593 = vsub.f32 %v1337, %v1403
  %v1594 = vsub.f32 %v1338, %v1405
  %v1595 = vsub.f32 %v1339, %v1407
  %v1596 = vsub.f32 %v1340, %v1409
  %v1597 = vsub.f32 %v1341, %v1411
  %v1598 = vsub.f32 %v1342, %v1413
  %v1599 = vsub.f32 %v1343, %v1415
  %v1600 = vsub.f32 %v1344, %v1417
  %v1601 = vsub.f32 %v1345, %v1419
  %v1602 = vsub.f32 %v1346, %v1421
  %v1603 = vsub.f32 %v1347, %v1423
  %v1604 = vsub.f32 %v1348, %v1425
  %v1605 = vsub.f32 %v1349, %v1427
  %v1606 = vsub.f32 %v1350, %v1429
  %v1607 = vsub.f32 %v1351, %v1431
  %v1608 = vsub.f32 %v1352, %v1433
  %v1609 = vsub.f32 %v1353, %v1435
  %v1610 = vsub.f32 %v1354, %v1437
  %v1611 = vsub.f32 %v1355, %v1439
  %v1612 = vsub.f32 %v1356, %v1441
  %v1613 = vsub.f32 %v1357, %v1443
  %v1614 = vsub.f32 %v1358, %v1445
  %v1615 = vsub.f32 %v1359, %v1447
  %v1616 = vsub.f32 %v1360, %v1449
  %v1617 = vsub.f32 %v1361, %v1451
  %v1618 = vsub.f32 %v1362, %v1453
  %v1619 = vsub.f32 %v1363, %v1455
  %v1620 = vsub.f32 %v1364, %v1457
  %v1621 = vsub.f32 %v1365, %v1459
  %v1622 = vsub.f32 %v1366, %v1461
  %v1623 = vsub.f32 %v1367, %v1463
  %v1624 = vsub.f32 %v1368, %v1465
  %v1625 = vsub.f32 %v1369, %v1467
  %v1626 = vsub.f32 %v1370, %v1469
  %v1627 = vsub.f32 %v1371, %v1471
  %v1628 = vsub.f32 %v1372, %v1473
  %v1629 = vsub.f32 %v1373, %v1475
  %v1630 = vsub.f32 %v1374, %v1477
  %v1631 = vsub.f32 %v1375, %v1479
  %v1632 = vsub.f32 %v1376, %v1481
  %v1633 = vsub.f32 %v1377, %v1483
  %v1634 = vsub.f32 %v1378, %v1485
  %v1635 = vsub.f32 %v1379, %v1487
  %v1636 = vsub.f32 %v1380, %v1489
  %v1637 = vsub.f32 %v1381, %v1491
  %v1638 = vsub.f32 %v1382, %v1493
  %v1639 = vsub.f32 %v1383, %v1495
  %v1640 = vsub.f32 %v1384, %v1497
  %v1641 = vsub.f32 %v1385, %v1499
  %v1642 = vsub.f32 %v1386, %v1501
  %v1643 = vsub.f32 %v1387, %v1503
  %v1644 = vsub.f32 %v1388, %v1505
  %v1645 = vsub.f32 %v1389, %v1507
  %v1646 = vsub.f32 %v1390, %v1509
  %v1647 = vsub.f32 %v1391, %v1511
  %v1648 = vsub.f32 %v1392, %v1513
  %v1649 = vsub.f32 %v1393, %v1515
  %v1650 = vsub.f32 %v1394, %v1517
  %v1651 = vsub.f32 %v1395, %v1519
  %v1652 = vsub.f32 %v1396, %v1521
  %v1653 = vsub.f32 %v1397, %v1523
  %v1654 = vsub.f32 %v1398, %v1525
  %v1655 = vsub.f32 %v1399, %v1527
  %v1656 = vsel %vm1335, %v1592, -1e+30
  %v1657 = vsel %vm1335, %v1593, -1e+30
  %v1658 = vsel %vm1335, %v1594, -1e+30
  %v1659 = vsel %vm1335, %v1595, -1e+30
  %v1660 = vsel %vm1335, %v1596, -1e+30
  %v1661 = vsel %vm1335, %v1597, -1e+30
  %v1662 = vsel %vm1335, %v1598, -1e+30
  %v1663 = vsel %vm1335, %v1599, -1e+30
  %v1664 = vsel %vm1335, %v1600, -1e+30
  %v1665 = vsel %vm1335, %v1601, -1e+30
  %v1666 = vsel %vm1335, %v1602, -1e+30
  %v1667 = vsel %vm1335, %v1603, -1e+30
  %v1668 = vsel %vm1335, %v1604, -1e+30
  %v1669 = vsel %vm1335, %v1605, -1e+30
  %v1670 = vsel %vm1335, %v1606, -1e+30
  %v1671 = vsel %vm1335, %v1607, -1e+30
  %v1672 = vsel %vm1335, %v1608, -1e+30
  %v1673 = vsel %vm1335, %v1609, -1e+30
  %v1674 = vsel %vm1335, %v1610, -1e+30
  %v1675 = vsel %vm1335, %v1611, -1e+30
  %v1676 = vsel %vm1335, %v1612, -1e+30
  %v1677 = vsel %vm1335, %v1613, -1e+30
  %v1678 = vsel %vm1335, %v1614, -1e+30
  %v1679 = vsel %vm1335, %v1615, -1e+30
  %v1680 = vsel %vm1335, %v1616, -1e+30
  %v1681 = vsel %vm1335, %v1617, -1e+30
  %v1682 = vsel %vm1335, %v1618, -1e+30
  %v1683 = vsel %vm1335, %v1619, -1e+30
  %v1684 = vsel %vm1335, %v1620, -1e+30
  %v1685 = vsel %vm1335, %v1621, -1e+30
  %v1686 = vsel %vm1335, %v1622, -1e+30
  %v1687 = vsel %vm1335, %v1623, -1e+30
  %v1688 = vsel %vm1335, %v1624, -1e+30
  %v1689 = vsel %vm1335, %v1625, -1e+30
  %v1690 = vsel %vm1335, %v1626, -1e+30
  %v1691 = vsel %vm1335, %v1627, -1e+30
  %v1692 = vsel %vm1335, %v1628, -1e+30
  %v1693 = vsel %vm1335, %v1629, -1e+30
  %v1694 = vsel %vm1335, %v1630, -1e+30
  %v1695 = vsel %vm1335, %v1631, -1e+30
  %v1696 = vsel %vm1335, %v1632, -1e+30
  %v1697 = vsel %vm1335, %v1633, -1e+30
  %v1698 = vsel %vm1335, %v1634, -1e+30
  %v1699 = vsel %vm1335, %v1635, -1e+30
  %v1700 = vsel %vm1335, %v1636, -1e+30
  %v1701 = vsel %vm1335, %v1637, -1e+30
  %v1702 = vsel %vm1335, %v1638, -1e+30
  %v1703 = vsel %vm1335, %v1639, -1e+30
  %v1704 = vsel %vm1335, %v1640, -1e+30
  %v1705 = vsel %vm1335, %v1641, -1e+30
  %v1706 = vsel %vm1335, %v1642, -1e+30
  %v1707 = vsel %vm1335, %v1643, -1e+30
  %v1708 = vsel %vm1335, %v1644, -1e+30
  %v1709 = vsel %vm1335, %v1645, -1e+30
  %v1710 = vsel %vm1335, %v1646, -1e+30
  %v1711 = vsel %vm1335, %v1647, -1e+30
  %v1712 = vsel %vm1335, %v1648, -1e+30
  %v1713 = vsel %vm1335, %v1649, -1e+30
  %v1714 = vsel %vm1335, %v1650, -1e+30
  %v1715 = vsel %vm1335, %v1651, -1e+30
  %v1716 = vsel %vm1335, %v1652, -1e+30
  %v1717 = vsel %vm1335, %v1653, -1e+30
  %v1718 = vsel %vm1335, %v1654, -1e+30
  %v1719 = vsel %vm1335, %v1655, -1e+30
  %v1720 = vsel %vm1332, %v1528, %v1656
  %v1721 = vsel %vm1332, %v1529, %v1657
  %v1722 = vsel %vm1332, %v1530, %v1658
  %v1723 = vsel %vm1332, %v1531, %v1659
  %v1724 = vsel %vm1332, %v1532, %v1660
  %v1725 = vsel %vm1332, %v1533, %v1661
  %v1726 = vsel %vm1332, %v1534, %v1662
  %v1727 = vsel %vm1332, %v1535, %v1663
  %v1728 = vsel %vm1332, %v1536, %v1664
  %v1729 = vsel %vm1332, %v1537, %v1665
  %v1730 = vsel %vm1332, %v1538, %v1666
  %v1731 = vsel %vm1332, %v1539, %v1667
  %v1732 = vsel %vm1332, %v1540, %v1668
  %v1733 = vsel %vm1332, %v1541, %v1669
  %v1734 = vsel %vm1332, %v1542, %v1670
  %v1735 = vsel %vm1332, %v1543, %v1671
  %v1736 = vsel %vm1332, %v1544, %v1672
  %v1737 = vsel %vm1332, %v1545, %v1673
  %v1738 = vsel %vm1332, %v1546, %v1674
  %v1739 = vsel %vm1332, %v1547, %v1675
  %v1740 = vsel %vm1332, %v1548, %v1676
  %v1741 = vsel %vm1332, %v1549, %v1677
  %v1742 = vsel %vm1332, %v1550, %v1678
  %v1743 = vsel %vm1332, %v1551, %v1679
  %v1744 = vsel %vm1332, %v1552, %v1680
  %v1745 = vsel %vm1332, %v1553, %v1681
  %v1746 = vsel %vm1332, %v1554, %v1682
  %v1747 = vsel %vm1332, %v1555, %v1683
  %v1748 = vsel %vm1332, %v1556, %v1684
  %v1749 = vsel %vm1332, %v1557, %v1685
  %v1750 = vsel %vm1332, %v1558, %v1686
  %v1751 = vsel %vm1332, %v1559, %v1687
  %v1752 = vsel %vm1332, %v1560, %v1688
  %v1753 = vsel %vm1332, %v1561, %v1689
  %v1754 = vsel %vm1332, %v1562, %v1690
  %v1755 = vsel %vm1332, %v1563, %v1691
  %v1756 = vsel %vm1332, %v1564, %v1692
  %v1757 = vsel %vm1332, %v1565, %v1693
  %v1758 = vsel %vm1332, %v1566, %v1694
  %v1759 = vsel %vm1332, %v1567, %v1695
  %v1760 = vsel %vm1332, %v1568, %v1696
  %v1761 = vsel %vm1332, %v1569, %v1697
  %v1762 = vsel %vm1332, %v1570, %v1698
  %v1763 = vsel %vm1332, %v1571, %v1699
  %v1764 = vsel %vm1332, %v1572, %v1700
  %v1765 = vsel %vm1332, %v1573, %v1701
  %v1766 = vsel %vm1332, %v1574, %v1702
  %v1767 = vsel %vm1332, %v1575, %v1703
  %v1768 = vsel %vm1332, %v1576, %v1704
  %v1769 = vsel %vm1332, %v1577, %v1705
  %v1770 = vsel %vm1332, %v1578, %v1706
  %v1771 = vsel %vm1332, %v1579, %v1707
  %v1772 = vsel %vm1332, %v1580, %v1708
  %v1773 = vsel %vm1332, %v1581, %v1709
  %v1774 = vsel %vm1332, %v1582, %v1710
  %v1775 = vsel %vm1332, %v1583, %v1711
  %v1776 = vsel %vm1332, %v1584, %v1712
  %v1777 = vsel %vm1332, %v1585, %v1713
  %v1778 = vsel %vm1332, %v1586, %v1714
  %v1779 = vsel %vm1332, %v1587, %v1715
  %v1780 = vsel %vm1332, %v1588, %v1716
  %v1781 = vsel %vm1332, %v1589, %v1717
  %v1782 = vsel %vm1332, %v1590, %v1718
  %v1783 = vsel %vm1332, %v1591, %v1719
  %v1784 = vmul.f32 %v1720, 1.442695
  %v1785 = vpow.pop %v1784
  %v1786 = vmul.f32 %v1721, 1.442695
  %v1787 = vpow.pop %v1786
  %v1788 = vmul.f32 %v1722, 1.442695
  %v1789 = vpow.pop %v1788
  %v1790 = vmul.f32 %v1723, 1.442695
  %v1791 = vpow.pop %v1790
  %v1792 = vmul.f32 %v1724, 1.442695
  %v1793 = vpow.pop %v1792
  %v1794 = vmul.f32 %v1725, 1.442695
  %v1795 = vpow.pop %v1794
  %v1796 = vmul.f32 %v1726, 1.442695
  %v1797 = vpow.pop %v1796
  %v1798 = vmul.f32 %v1727, 1.442695
  %v1799 = vpow.pop %v1798
  %v1800 = vmul.f32 %v1728, 1.442695
  %v1801 = vpow.pop %v1800
  %v1802 = vmul.f32 %v1729, 1.442695
  %v1803 = vpow.pop %v1802
  %v1804 = vmul.f32 %v1730, 1.442695
  %v1805 = vpow.pop %v1804
  %v1806 = vmul.f32 %v1731, 1.442695
  %v1807 = vpow.pop %v1806
  %v1808 = vmul.f32 %v1732, 1.442695
  %v1809 = vpow.pop %v1808
  %v1810 = vmul.f32 %v1733, 1.442695
  %v1811 = vpow.pop %v1810
  %v1812 = vmul.f32 %v1734, 1.442695
  %v1813 = vpow.pop %v1812
  %v1814 = vmul.f32 %v1735, 1.442695
  %v1815 = vpow.pop %v1814
  %v1816 = vmul.f32 %v1736, 1.442695
  %v1817 = vpow.pop %v1816
  %v1818 = vmul.f32 %v1737, 1.442695
  %v1819 = vpow.pop %v1818
  %v1820 = vmul.f32 %v1738, 1.442695
  %v1821 = vpow.pop %v1820
  %v1822 = vmul.f32 %v1739, 1.442695
  %v1823 = vpow.pop %v1822
  %v1824 = vmul.f32 %v1740, 1.442695
  %v1825 = vpow.pop %v1824
  %v1826 = vmul.f32 %v1741, 1.442695
  %v1827 = vpow.pop %v1826
  %v1828 = vmul.f32 %v1742, 1.442695
  %v1829 = vpow.pop %v1828
  %v1830 = vmul.f32 %v1743, 1.442695
  %v1831 = vpow.pop %v1830
  %v1832 = vmul.f32 %v1744, 1.442695
  %v1833 = vpow.pop %v1832
  %v1834 = vmul.f32 %v1745, 1.442695
  %v1835 = vpow.pop %v1834
  %v1836 = vmul.f32 %v1746, 1.442695
  %v1837 = vpow.pop %v1836
  %v1838 = vmul.f32 %v1747, 1.442695
  %v1839 = vpow.pop %v1838
  %v1840 = vmul.f32 %v1748, 1.442695
  %v1841 = vpow.pop %v1840
  %v1842 = vmul.f32 %v1749, 1.442695
  %v1843 = vpow.pop %v1842
  %v1844 = vmul.f32 %v1750, 1.442695
  %v1845 = vpow.pop %v1844
  %v1846 = vmul.f32 %v1751, 1.442695
  %v1847 = vpow.pop %v1846
  %v1848 = vmul.f32 %v1752, 1.442695
  %v1849 = vpow.pop %v1848
  %v1850 = vmul.f32 %v1753, 1.442695
  %v1851 = vpow.pop %v1850
  %v1852 = vmul.f32 %v1754, 1.442695
  %v1853 = vpow.pop %v1852
  %v1854 = vmul.f32 %v1755, 1.442695
  %v1855 = vpow.pop %v1854
  %v1856 = vmul.f32 %v1756, 1.442695
  %v1857 = vpow.pop %v1856
  %v1858 = vmul.f32 %v1757, 1.442695
  %v1859 = vpow.pop %v1858
  %v1860 = vmul.f32 %v1758, 1.442695
  %v1861 = vpow.pop %v1860
  %v1862 = vmul.f32 %v1759, 1.442695
  %v1863 = vpow.pop %v1862
  %v1864 = vmul.f32 %v1760, 1.442695
  %v1865 = vpow.pop %v1864
  %v1866 = vmul.f32 %v1761, 1.442695
  %v1867 = vpow.pop %v1866
  %v1868 = vmul.f32 %v1762, 1.442695
  %v1869 = vpow.pop %v1868
  %v1870 = vmul.f32 %v1763, 1.442695
  %v1871 = vpow.pop %v1870
  %v1872 = vmul.f32 %v1764, 1.442695
  %v1873 = vpow.pop %v1872
  %v1874 = vmul.f32 %v1765, 1.442695
  %v1875 = vpow.pop %v1874
  %v1876 = vmul.f32 %v1766, 1.442695
  %v1877 = vpow.pop %v1876
  %v1878 = vmul.f32 %v1767, 1.442695
  %v1879 = vpow.pop %v1878
  %v1880 = vmul.f32 %v1768, 1.442695
  %v1881 = vpow.pop %v1880
  %v1882 = vmul.f32 %v1769, 1.442695
  %v1883 = vpow.pop %v1882
  %v1884 = vmul.f32 %v1770, 1.442695
  %v1885 = vpow.pop %v1884
  %v1886 = vmul.f32 %v1771, 1.442695
  %v1887 = vpow.pop %v1886
  %v1888 = vmul.f32 %v1772, 1.442695
  %v1889 = vpow.pop %v1888
  %v1890 = vmul.f32 %v1773, 1.442695
  %v1891 = vpow.pop %v1890
  %v1892 = vmul.f32 %v1774, 1.442695
  %v1893 = vpow.pop %v1892
  %v1894 = vmul.f32 %v1775, 1.442695
  %v1895 = vpow.pop %v1894
  %v1896 = vmul.f32 %v1776, 1.442695
  %v1897 = vpow.pop %v1896
  %v1898 = vmul.f32 %v1777, 1.442695
  %v1899 = vpow.pop %v1898
  %v1900 = vmul.f32 %v1778, 1.442695
  %v1901 = vpow.pop %v1900
  %v1902 = vmul.f32 %v1779, 1.442695
  %v1903 = vpow.pop %v1902
  %v1904 = vmul.f32 %v1780, 1.442695
  %v1905 = vpow.pop %v1904
  %v1906 = vmul.f32 %v1781, 1.442695
  %v1907 = vpow.pop %v1906
  %v1908 = vmul.f32 %v1782, 1.442695
  %v1909 = vpow.pop %v1908
  %v1910 = vmul.f32 %v1783, 1.442695
  %v1911 = vpow.pop %v1910
  %v1912 = vadd.f32 %v1785, 1.0
  %v1913 = vadd.f32 %v1787, 1.0
  %v1914 = vadd.f32 %v1789, 1.0
  %v1915 = vadd.f32 %v1791, 1.0
  %v1916 = vadd.f32 %v1793, 1.0
  %v1917 = vadd.f32 %v1795, 1.0
  %v1918 = vadd.f32 %v1797, 1.0
  %v1919 = vadd.f32 %v1799, 1.0
  %v1920 = vadd.f32 %v1801, 1.0
  %v1921 = vadd.f32 %v1803, 1.0
  %v1922 = vadd.f32 %v1805, 1.0
  %v1923 = vadd.f32 %v1807, 1.0
  %v1924 = vadd.f32 %v1809, 1.0
  %v1925 = vadd.f32 %v1811, 1.0
  %v1926 = vadd.f32 %v1813, 1.0
  %v1927 = vadd.f32 %v1815, 1.0
  %v1928 = vadd.f32 %v1817, 1.0
  %v1929 = vadd.f32 %v1819, 1.0
  %v1930 = vadd.f32 %v1821, 1.0
  %v1931 = vadd.f32 %v1823, 1.0
  %v1932 = vadd.f32 %v1825, 1.0
  %v1933 = vadd.f32 %v1827, 1.0
  %v1934 = vadd.f32 %v1829, 1.0
  %v1935 = vadd.f32 %v1831, 1.0
  %v1936 = vadd.f32 %v1833, 1.0
  %v1937 = vadd.f32 %v1835, 1.0
  %v1938 = vadd.f32 %v1837, 1.0
  %v1939 = vadd.f32 %v1839, 1.0
  %v1940 = vadd.f32 %v1841, 1.0
  %v1941 = vadd.f32 %v1843, 1.0
  %v1942 = vadd.f32 %v1845, 1.0
  %v1943 = vadd.f32 %v1847, 1.0
  %v1944 = vadd.f32 %v1849, 1.0
  %v1945 = vadd.f32 %v1851, 1.0
  %v1946 = vadd.f32 %v1853, 1.0
  %v1947 = vadd.f32 %v1855, 1.0
  %v1948 = vadd.f32 %v1857, 1.0
  %v1949 = vadd.f32 %v1859, 1.0
  %v1950 = vadd.f32 %v1861, 1.0
  %v1951 = vadd.f32 %v1863, 1.0
  %v1952 = vadd.f32 %v1865, 1.0
  %v1953 = vadd.f32 %v1867, 1.0
  %v1954 = vadd.f32 %v1869, 1.0
  %v1955 = vadd.f32 %v1871, 1.0
  %v1956 = vadd.f32 %v1873, 1.0
  %v1957 = vadd.f32 %v1875, 1.0
  %v1958 = vadd.f32 %v1877, 1.0
  %v1959 = vadd.f32 %v1879, 1.0
  %v1960 = vadd.f32 %v1881, 1.0
  %v1961 = vadd.f32 %v1883, 1.0
  %v1962 = vadd.f32 %v1885, 1.0
  %v1963 = vadd.f32 %v1887, 1.0
  %v1964 = vadd.f32 %v1889, 1.0
  %v1965 = vadd.f32 %v1891, 1.0
  %v1966 = vadd.f32 %v1893, 1.0
  %v1967 = vadd.f32 %v1895, 1.0
  %v1968 = vadd.f32 %v1897, 1.0
  %v1969 = vadd.f32 %v1899, 1.0
  %v1970 = vadd.f32 %v1901, 1.0
  %v1971 = vadd.f32 %v1903, 1.0
  %v1972 = vadd.f32 %v1905, 1.0
  %v1973 = vadd.f32 %v1907, 1.0
  %v1974 = vadd.f32 %v1909, 1.0
  %v1975 = vadd.f32 %v1911, 1.0
  %v1976 = vrcp.pop %v1912
  %v1977 = vmul.f32 1.0, %v1976
  %v1978 = vrcp.pop %v1913
  %v1979 = vmul.f32 1.0, %v1978
  %v1980 = vrcp.pop %v1914
  %v1981 = vmul.f32 1.0, %v1980
  %v1982 = vrcp.pop %v1915
  %v1983 = vmul.f32 1.0, %v1982
  %v1984 = vrcp.pop %v1916
  %v1985 = vmul.f32 1.0, %v1984
  %v1986 = vrcp.pop %v1917
  %v1987 = vmul.f32 1.0, %v1986
  %v1988 = vrcp.pop %v1918
  %v1989 = vmul.f32 1.0, %v1988
  %v1990 = vrcp.pop %v1919
  %v1991 = vmul.f32 1.0, %v1990
  %v1992 = vrcp.pop %v1920
  %v1993 = vmul.f32 1.0, %v1992
  %v1994 = vrcp.pop %v1921
  %v1995 = vmul.f32 1.0, %v1994
  %v1996 = vrcp.pop %v1922
  %v1997 = vmul.f32 1.0, %v1996
  %v1998 = vrcp.pop %v1923
  %v1999 = vmul.f32 1.0, %v1998
  %v2000 = vrcp.pop %v1924
  %v2001 = vmul.f32 1.0, %v2000
  %v2002 = vrcp.pop %v1925
  %v2003 = vmul.f32 1.0, %v2002
  %v2004 = vrcp.pop %v1926
  %v2005 = vmul.f32 1.0, %v2004
  %v2006 = vrcp.pop %v1927
  %v2007 = vmul.f32 1.0, %v2006
  %v2008 = vrcp.pop %v1928
  %v2009 = vmul.f32 1.0, %v2008
  %v2010 = vrcp.pop %v1929
  %v2011 = vmul.f32 1.0, %v2010
  %v2012 = vrcp.pop %v1930
  %v2013 = vmul.f32 1.0, %v2012
  %v2014 = vrcp.pop %v1931
  %v2015 = vmul.f32 1.0, %v2014
  %v2016 = vrcp.pop %v1932
  %v2017 = vmul.f32 1.0, %v2016
  %v2018 = vrcp.pop %v1933
  %v2019 = vmul.f32 1.0, %v2018
  %v2020 = vrcp.pop %v1934
  %v2021 = vmul.f32 1.0, %v2020
  %v2022 = vrcp.pop %v1935
  %v2023 = vmul.f32 1.0, %v2022
  %v2024 = vrcp.pop %v1936
  %v2025 = vmul.f32 1.0, %v2024
  %v2026 = vrcp.pop %v1937
  %v2027 = vmul.f32 1.0, %v2026
  %v2028 = vrcp.pop %v1938
  %v2029 = vmul.f32 1.0, %v2028
  %v2030 = vrcp.pop %v1939
  %v2031 = vmul.f32 1.0, %v2030
  %v2032 = vrcp.pop %v1940
  %v2033 = vmul.f32 1.0, %v2032
  %v2034 = vrcp.pop %v1941
  %v2035 = vmul.f32 1.0, %v2034
  %v2036 = vrcp.pop %v1942
  %v2037 = vmul.f32 1.0, %v2036
  %v2038 = vrcp.pop %v1943
  %v2039 = vmul.f32 1.0, %v2038
  %v2040 = vrcp.pop %v1944
  %v2041 = vmul.f32 1.0, %v2040
  %v2042 = vrcp.pop %v1945
  %v2043 = vmul.f32 1.0, %v2042
  %v2044 = vrcp.pop %v1946
  %v2045 = vmul.f32 1.0, %v2044
  %v2046 = vrcp.pop %v1947
  %v2047 = vmul.f32 1.0, %v2046
  %v2048 = vrcp.pop %v1948
  %v2049 = vmul.f32 1.0, %v2048
  %v2050 = vrcp.pop %v1949
  %v2051 = vmul.f32 1.0, %v2050
  %v2052 = vrcp.pop %v1950
  %v2053 = vmul.f32 1.0, %v2052
  %v2054 = vrcp.pop %v1951
  %v2055 = vmul.f32 1.0, %v2054
  %v2056 = vrcp.pop %v1952
  %v2057 = vmul.f32 1.0, %v2056
  %v2058 = vrcp.pop %v1953
  %v2059 = vmul.f32 1.0, %v2058
  %v2060 = vrcp.pop %v1954
  %v2061 = vmul.f32 1.0, %v2060
  %v2062 = vrcp.pop %v1955
  %v2063 = vmul.f32 1.0, %v2062
  %v2064 = vrcp.pop %v1956
  %v2065 = vmul.f32 1.0, %v2064
  %v2066 = vrcp.pop %v1957
  %v2067 = vmul.f32 1.0, %v2066
  %v2068 = vrcp.pop %v1958
  %v2069 = vmul.f32 1.0, %v2068
  %v2070 = vrcp.pop %v1959
  %v2071 = vmul.f32 1.0, %v2070
  %v2072 = vrcp.pop %v1960
  %v2073 = vmul.f32 1.0, %v2072
  %v2074 = vrcp.pop %v1961
  %v2075 = vmul.f32 1.0, %v2074
  %v2076 = vrcp.pop %v1962
  %v2077 = vmul.f32 1.0, %v2076
  %v2078 = vrcp.pop %v1963
  %v2079 = vmul.f32 1.0, %v2078
  %v2080 = vrcp.pop %v1964
  %v2081 = vmul.f32 1.0, %v2080
  %v2082 = vrcp.pop %v1965
  %v2083 = vmul.f32 1.0, %v2082
  %v2084 = vrcp.pop %v1966
  %v2085 = vmul.f32 1.0, %v2084
  %v2086 = vrcp.pop %v1967
  %v2087 = vmul.f32 1.0, %v2086
  %v2088 = vrcp.pop %v1968
  %v2089 = vmul.f32 1.0, %v2088
  %v2090 = vrcp.pop %v1969
  %v2091 = vmul.f32 1.0, %v2090
  %v2092 = vrcp.pop %v1970
  %v2093 = vmul.f32 1.0, %v2092
  %v2094 = vrcp.pop %v1971
  %v2095 = vmul.f32 1.0, %v2094
  %v2096 = vrcp.pop %v1972
  %v2097 = vmul.f32 1.0, %v2096
  %v2098 = vrcp.pop %v1973
  %v2099 = vmul.f32 1.0, %v2098
  %v2100 = vrcp.pop %v1974
  %v2101 = vmul.f32 1.0, %v2100
  %v2102 = vrcp.pop %v1975
  %v2103 = vmul.f32 1.0, %v2102
  %v2104 = vsel %vm1335, %v1785, 0.0
  %v2105 = vsel %vm1335, %v1787, 0.0
  %v2106 = vsel %vm1335, %v1789, 0.0
  %v2107 = vsel %vm1335, %v1791, 0.0
  %v2108 = vsel %vm1335, %v1793, 0.0
  %v2109 = vsel %vm1335, %v1795, 0.0
  %v2110 = vsel %vm1335, %v1797, 0.0
  %v2111 = vsel %vm1335, %v1799, 0.0
  %v2112 = vsel %vm1335, %v1801, 0.0
  %v2113 = vsel %vm1335, %v1803, 0.0
  %v2114 = vsel %vm1335, %v1805, 0.0
  %v2115 = vsel %vm1335, %v1807, 0.0
  %v2116 = vsel %vm1335, %v1809, 0.0
  %v2117 = vsel %vm1335, %v1811, 0.0
  %v2118 = vsel %vm1335, %v1813, 0.0
  %v2119 = vsel %vm1335, %v1815, 0.0
  %v2120 = vsel %vm1335, %v1817, 0.0
  %v2121 = vsel %vm1335, %v1819, 0.0
  %v2122 = vsel %vm1335, %v1821, 0.0
  %v2123 = vsel %vm1335, %v1823, 0.0
  %v2124 = vsel %vm1335, %v1825, 0.0
  %v2125 = vsel %vm1335, %v1827, 0.0
  %v2126 = vsel %vm1335, %v1829, 0.0
  %v2127 = vsel %vm1335, %v1831, 0.0
  %v2128 = vsel %vm1335, %v1833, 0.0
  %v2129 = vsel %vm1335, %v1835, 0.0
  %v2130 = vsel %vm1335, %v1837, 0.0
  %v2131 = vsel %vm1335, %v1839, 0.0
  %v2132 = vsel %vm1335, %v1841, 0.0
  %v2133 = vsel %vm1335, %v1843, 0.0
  %v2134 = vsel %vm1335, %v1845, 0.0
  %v2135 = vsel %vm1335, %v1847, 0.0
  %v2136 = vsel %vm1335, %v1849, 0.0
  %v2137 = vsel %vm1335, %v1851, 0.0
  %v2138 = vsel %vm1335, %v1853, 0.0
  %v2139 = vsel %vm1335, %v1855, 0.0
  %v2140 = vsel %vm1335, %v1857, 0.0
  %v2141 = vsel %vm1335, %v1859, 0.0
  %v2142 = vsel %vm1335, %v1861, 0.0
  %v2143 = vsel %vm1335, %v1863, 0.0
  %v2144 = vsel %vm1335, %v1865, 0.0
  %v2145 = vsel %vm1335, %v1867, 0.0
  %v2146 = vsel %vm1335, %v1869, 0.0
  %v2147 = vsel %vm1335, %v1871, 0.0
  %v2148 = vsel %vm1335, %v1873, 0.0
  %v2149 = vsel %vm1335, %v1875, 0.0
  %v2150 = vsel %vm1335, %v1877, 0.0
  %v2151 = vsel %vm1335, %v1879, 0.0
  %v2152 = vsel %vm1335, %v1881, 0.0
  %v2153 = vsel %vm1335, %v1883, 0.0
  %v2154 = vsel %vm1335, %v1885, 0.0
  %v2155 = vsel %vm1335, %v1887, 0.0
  %v2156 = vsel %vm1335, %v1889, 0.0
  %v2157 = vsel %vm1335, %v1891, 0.0
  %v2158 = vsel %vm1335, %v1893, 0.0
  %v2159 = vsel %vm1335, %v1895, 0.0
  %v2160 = vsel %vm1335, %v1897, 0.0
  %v2161 = vsel %vm1335, %v1899, 0.0
  %v2162 = vsel %vm1335, %v1901, 0.0
  %v2163 = vsel %vm1335, %v1903, 0.0
  %v2164 = vsel %vm1335, %v1905, 0.0
  %v2165 = vsel %vm1335, %v1907, 0.0
  %v2166 = vsel %vm1335, %v1909, 0.0
  %v2167 = vsel %vm1335, %v1911, 0.0
  %2168 = vadd.xlane.f32.xlu0 %v2104
  %v2169 = vpop.xlane.xlu0 %2168
  %2170 = vadd.xlane.f32.xlu0 %v2105
  %v2171 = vpop.xlane.xlu0 %2170
  %2172 = vadd.xlane.f32.xlu0 %v2106
  %v2173 = vpop.xlane.xlu0 %2172
  %2174 = vadd.xlane.f32.xlu0 %v2107
  %v2175 = vpop.xlane.xlu0 %2174
  %2176 = vadd.xlane.f32.xlu0 %v2108
  %v2177 = vpop.xlane.xlu0 %2176
  %2178 = vadd.xlane.f32.xlu0 %v2109
  %v2179 = vpop.xlane.xlu0 %2178
  %2180 = vadd.xlane.f32.xlu0 %v2110
  %v2181 = vpop.xlane.xlu0 %2180
  %2182 = vadd.xlane.f32.xlu0 %v2111
  %v2183 = vpop.xlane.xlu0 %2182
  %2184 = vadd.xlane.f32.xlu0 %v2112
  %v2185 = vpop.xlane.xlu0 %2184
  %2186 = vadd.xlane.f32.xlu0 %v2113
  %v2187 = vpop.xlane.xlu0 %2186
  %2188 = vadd.xlane.f32.xlu0 %v2114
  %v2189 = vpop.xlane.xlu0 %2188
  %2190 = vadd.xlane.f32.xlu0 %v2115
  %v2191 = vpop.xlane.xlu0 %2190
  %2192 = vadd.xlane.f32.xlu0 %v2116
  %v2193 = vpop.xlane.xlu0 %2192
  %2194 = vadd.xlane.f32.xlu0 %v2117
  %v2195 = vpop.xlane.xlu0 %2194
  %2196 = vadd.xlane.f32.xlu0 %v2118
  %v2197 = vpop.xlane.xlu0 %2196
  %2198 = vadd.xlane.f32.xlu0 %v2119
  %v2199 = vpop.xlane.xlu0 %2198
  %2200 = vadd.xlane.f32.xlu0 %v2120
  %v2201 = vpop.xlane.xlu0 %2200
  %2202 = vadd.xlane.f32.xlu0 %v2121
  %v2203 = vpop.xlane.xlu0 %2202
  %2204 = vadd.xlane.f32.xlu0 %v2122
  %v2205 = vpop.xlane.xlu0 %2204
  %2206 = vadd.xlane.f32.xlu0 %v2123
  %v2207 = vpop.xlane.xlu0 %2206
  %2208 = vadd.xlane.f32.xlu0 %v2124
  %v2209 = vpop.xlane.xlu0 %2208
  %2210 = vadd.xlane.f32.xlu0 %v2125
  %v2211 = vpop.xlane.xlu0 %2210
  %2212 = vadd.xlane.f32.xlu0 %v2126
  %v2213 = vpop.xlane.xlu0 %2212
  %2214 = vadd.xlane.f32.xlu0 %v2127
  %v2215 = vpop.xlane.xlu0 %2214
  %2216 = vadd.xlane.f32.xlu0 %v2128
  %v2217 = vpop.xlane.xlu0 %2216
  %2218 = vadd.xlane.f32.xlu0 %v2129
  %v2219 = vpop.xlane.xlu0 %2218
  %2220 = vadd.xlane.f32.xlu0 %v2130
  %v2221 = vpop.xlane.xlu0 %2220
  %2222 = vadd.xlane.f32.xlu0 %v2131
  %v2223 = vpop.xlane.xlu0 %2222
  %2224 = vadd.xlane.f32.xlu0 %v2132
  %v2225 = vpop.xlane.xlu0 %2224
  %2226 = vadd.xlane.f32.xlu0 %v2133
  %v2227 = vpop.xlane.xlu0 %2226
  %2228 = vadd.xlane.f32.xlu0 %v2134
  %v2229 = vpop.xlane.xlu0 %2228
  %2230 = vadd.xlane.f32.xlu0 %v2135
  %v2231 = vpop.xlane.xlu0 %2230
  %2232 = vadd.xlane.f32.xlu0 %v2136
  %v2233 = vpop.xlane.xlu0 %2232
  %2234 = vadd.xlane.f32.xlu0 %v2137
  %v2235 = vpop.xlane.xlu0 %2234
  %2236 = vadd.xlane.f32.xlu0 %v2138
  %v2237 = vpop.xlane.xlu0 %2236
  %2238 = vadd.xlane.f32.xlu0 %v2139
  %v2239 = vpop.xlane.xlu0 %2238
  %2240 = vadd.xlane.f32.xlu0 %v2140
  %v2241 = vpop.xlane.xlu0 %2240
  %2242 = vadd.xlane.f32.xlu0 %v2141
  %v2243 = vpop.xlane.xlu0 %2242
  %2244 = vadd.xlane.f32.xlu0 %v2142
  %v2245 = vpop.xlane.xlu0 %2244
  %2246 = vadd.xlane.f32.xlu0 %v2143
  %v2247 = vpop.xlane.xlu0 %2246
  %2248 = vadd.xlane.f32.xlu0 %v2144
  %v2249 = vpop.xlane.xlu0 %2248
  %2250 = vadd.xlane.f32.xlu0 %v2145
  %v2251 = vpop.xlane.xlu0 %2250
  %2252 = vadd.xlane.f32.xlu0 %v2146
  %v2253 = vpop.xlane.xlu0 %2252
  %2254 = vadd.xlane.f32.xlu0 %v2147
  %v2255 = vpop.xlane.xlu0 %2254
  %2256 = vadd.xlane.f32.xlu0 %v2148
  %v2257 = vpop.xlane.xlu0 %2256
  %2258 = vadd.xlane.f32.xlu0 %v2149
  %v2259 = vpop.xlane.xlu0 %2258
  %2260 = vadd.xlane.f32.xlu0 %v2150
  %v2261 = vpop.xlane.xlu0 %2260
  %2262 = vadd.xlane.f32.xlu0 %v2151
  %v2263 = vpop.xlane.xlu0 %2262
  %2264 = vadd.xlane.f32.xlu0 %v2152
  %v2265 = vpop.xlane.xlu0 %2264
  %2266 = vadd.xlane.f32.xlu0 %v2153
  %v2267 = vpop.xlane.xlu0 %2266
  %2268 = vadd.xlane.f32.xlu0 %v2154
  %v2269 = vpop.xlane.xlu0 %2268
  %2270 = vadd.xlane.f32.xlu0 %v2155
  %v2271 = vpop.xlane.xlu0 %2270
  %2272 = vadd.xlane.f32.xlu0 %v2156
  %v2273 = vpop.xlane.xlu0 %2272
  %2274 = vadd.xlane.f32.xlu0 %v2157
  %v2275 = vpop.xlane.xlu0 %2274
  %2276 = vadd.xlane.f32.xlu0 %v2158
  %v2277 = vpop.xlane.xlu0 %2276
  %2278 = vadd.xlane.f32.xlu0 %v2159
  %v2279 = vpop.xlane.xlu0 %2278
  %2280 = vadd.xlane.f32.xlu0 %v2160
  %v2281 = vpop.xlane.xlu0 %2280
  %2282 = vadd.xlane.f32.xlu0 %v2161
  %v2283 = vpop.xlane.xlu0 %2282
  %2284 = vadd.xlane.f32.xlu0 %v2162
  %v2285 = vpop.xlane.xlu0 %2284
  %2286 = vadd.xlane.f32.xlu0 %v2163
  %v2287 = vpop.xlane.xlu0 %2286
  %2288 = vadd.xlane.f32.xlu0 %v2164
  %v2289 = vpop.xlane.xlu0 %2288
  %2290 = vadd.xlane.f32.xlu0 %v2165
  %v2291 = vpop.xlane.xlu0 %2290
  %2292 = vadd.xlane.f32.xlu0 %v2166
  %v2293 = vpop.xlane.xlu0 %2292
  %2294 = vadd.xlane.f32.xlu0 %v2167
  %v2295 = vpop.xlane.xlu0 %2294
  %v2296 = vrcp.pop %v2169
  %v2297 = vmul.f32 %v1785, %v2296
  %v2298 = vrcp.pop %v2171
  %v2299 = vmul.f32 %v1787, %v2298
  %v2300 = vrcp.pop %v2173
  %v2301 = vmul.f32 %v1789, %v2300
  %v2302 = vrcp.pop %v2175
  %v2303 = vmul.f32 %v1791, %v2302
  %v2304 = vrcp.pop %v2177
  %v2305 = vmul.f32 %v1793, %v2304
  %v2306 = vrcp.pop %v2179
  %v2307 = vmul.f32 %v1795, %v2306
  %v2308 = vrcp.pop %v2181
  %v2309 = vmul.f32 %v1797, %v2308
  %v2310 = vrcp.pop %v2183
  %v2311 = vmul.f32 %v1799, %v2310
  %v2312 = vrcp.pop %v2185
  %v2313 = vmul.f32 %v1801, %v2312
  %v2314 = vrcp.pop %v2187
  %v2315 = vmul.f32 %v1803, %v2314
  %v2316 = vrcp.pop %v2189
  %v2317 = vmul.f32 %v1805, %v2316
  %v2318 = vrcp.pop %v2191
  %v2319 = vmul.f32 %v1807, %v2318
  %v2320 = vrcp.pop %v2193
  %v2321 = vmul.f32 %v1809, %v2320
  %v2322 = vrcp.pop %v2195
  %v2323 = vmul.f32 %v1811, %v2322
  %v2324 = vrcp.pop %v2197
  %v2325 = vmul.f32 %v1813, %v2324
  %v2326 = vrcp.pop %v2199
  %v2327 = vmul.f32 %v1815, %v2326
  %v2328 = vrcp.pop %v2201
  %v2329 = vmul.f32 %v1817, %v2328
  %v2330 = vrcp.pop %v2203
  %v2331 = vmul.f32 %v1819, %v2330
  %v2332 = vrcp.pop %v2205
  %v2333 = vmul.f32 %v1821, %v2332
  %v2334 = vrcp.pop %v2207
  %v2335 = vmul.f32 %v1823, %v2334
  %v2336 = vrcp.pop %v2209
  %v2337 = vmul.f32 %v1825, %v2336
  %v2338 = vrcp.pop %v2211
  %v2339 = vmul.f32 %v1827, %v2338
  %v2340 = vrcp.pop %v2213
  %v2341 = vmul.f32 %v1829, %v2340
  %v2342 = vrcp.pop %v2215
  %v2343 = vmul.f32 %v1831, %v2342
  %v2344 = vrcp.pop %v2217
  %v2345 = vmul.f32 %v1833, %v2344
  %v2346 = vrcp.pop %v2219
  %v2347 = vmul.f32 %v1835, %v2346
  %v2348 = vrcp.pop %v2221
  %v2349 = vmul.f32 %v1837, %v2348
  %v2350 = vrcp.pop %v2223
  %v2351 = vmul.f32 %v1839, %v2350
  %v2352 = vrcp.pop %v2225
  %v2353 = vmul.f32 %v1841, %v2352
  %v2354 = vrcp.pop %v2227
  %v2355 = vmul.f32 %v1843, %v2354
  %v2356 = vrcp.pop %v2229
  %v2357 = vmul.f32 %v1845, %v2356
  %v2358 = vrcp.pop %v2231
  %v2359 = vmul.f32 %v1847, %v2358
  %v2360 = vrcp.pop %v2233
  %v2361 = vmul.f32 %v1849, %v2360
  %v2362 = vrcp.pop %v2235
  %v2363 = vmul.f32 %v1851, %v2362
  %v2364 = vrcp.pop %v2237
  %v2365 = vmul.f32 %v1853, %v2364
  %v2366 = vrcp.pop %v2239
  %v2367 = vmul.f32 %v1855, %v2366
  %v2368 = vrcp.pop %v2241
  %v2369 = vmul.f32 %v1857, %v2368
  %v2370 = vrcp.pop %v2243
  %v2371 = vmul.f32 %v1859, %v2370
  %v2372 = vrcp.pop %v2245
  %v2373 = vmul.f32 %v1861, %v2372
  %v2374 = vrcp.pop %v2247
  %v2375 = vmul.f32 %v1863, %v2374
  %v2376 = vrcp.pop %v2249
  %v2377 = vmul.f32 %v1865, %v2376
  %v2378 = vrcp.pop %v2251
  %v2379 = vmul.f32 %v1867, %v2378
  %v2380 = vrcp.pop %v2253
  %v2381 = vmul.f32 %v1869, %v2380
  %v2382 = vrcp.pop %v2255
  %v2383 = vmul.f32 %v1871, %v2382
  %v2384 = vrcp.pop %v2257
  %v2385 = vmul.f32 %v1873, %v2384
  %v2386 = vrcp.pop %v2259
  %v2387 = vmul.f32 %v1875, %v2386
  %v2388 = vrcp.pop %v2261
  %v2389 = vmul.f32 %v1877, %v2388
  %v2390 = vrcp.pop %v2263
  %v2391 = vmul.f32 %v1879, %v2390
  %v2392 = vrcp.pop %v2265
  %v2393 = vmul.f32 %v1881, %v2392
  %v2394 = vrcp.pop %v2267
  %v2395 = vmul.f32 %v1883, %v2394
  %v2396 = vrcp.pop %v2269
  %v2397 = vmul.f32 %v1885, %v2396
  %v2398 = vrcp.pop %v2271
  %v2399 = vmul.f32 %v1887, %v2398
  %v2400 = vrcp.pop %v2273
  %v2401 = vmul.f32 %v1889, %v2400
  %v2402 = vrcp.pop %v2275
  %v2403 = vmul.f32 %v1891, %v2402
  %v2404 = vrcp.pop %v2277
  %v2405 = vmul.f32 %v1893, %v2404
  %v2406 = vrcp.pop %v2279
  %v2407 = vmul.f32 %v1895, %v2406
  %v2408 = vrcp.pop %v2281
  %v2409 = vmul.f32 %v1897, %v2408
  %v2410 = vrcp.pop %v2283
  %v2411 = vmul.f32 %v1899, %v2410
  %v2412 = vrcp.pop %v2285
  %v2413 = vmul.f32 %v1901, %v2412
  %v2414 = vrcp.pop %v2287
  %v2415 = vmul.f32 %v1903, %v2414
  %v2416 = vrcp.pop %v2289
  %v2417 = vmul.f32 %v1905, %v2416
  %v2418 = vrcp.pop %v2291
  %v2419 = vmul.f32 %v1907, %v2418
  %v2420 = vrcp.pop %v2293
  %v2421 = vmul.f32 %v1909, %v2420
  %v2422 = vrcp.pop %v2295
  %v2423 = vmul.f32 %v1911, %v2422
  %vm2424 = vcmp.eq.s32.totalorder %v1331, 0
  %vm2425 = vcmp.eq.s32.totalorder %v1331, 1
  %v2426 = vsub.f32 1.0, %v1977
  %v2427 = vsub.f32 1.0, %v1979
  %v2428 = vsub.f32 1.0, %v1981
  %v2429 = vsub.f32 1.0, %v1983
  %v2430 = vsub.f32 1.0, %v1985
  %v2431 = vsub.f32 1.0, %v1987
  %v2432 = vsub.f32 1.0, %v1989
  %v2433 = vsub.f32 1.0, %v1991
  %v2434 = vsub.f32 1.0, %v1993
  %v2435 = vsub.f32 1.0, %v1995
  %v2436 = vsub.f32 1.0, %v1997
  %v2437 = vsub.f32 1.0, %v1999
  %v2438 = vsub.f32 1.0, %v2001
  %v2439 = vsub.f32 1.0, %v2003
  %v2440 = vsub.f32 1.0, %v2005
  %v2441 = vsub.f32 1.0, %v2007
  %v2442 = vsub.f32 1.0, %v2009
  %v2443 = vsub.f32 1.0, %v2011
  %v2444 = vsub.f32 1.0, %v2013
  %v2445 = vsub.f32 1.0, %v2015
  %v2446 = vsub.f32 1.0, %v2017
  %v2447 = vsub.f32 1.0, %v2019
  %v2448 = vsub.f32 1.0, %v2021
  %v2449 = vsub.f32 1.0, %v2023
  %v2450 = vsub.f32 1.0, %v2025
  %v2451 = vsub.f32 1.0, %v2027
  %v2452 = vsub.f32 1.0, %v2029
  %v2453 = vsub.f32 1.0, %v2031
  %v2454 = vsub.f32 1.0, %v2033
  %v2455 = vsub.f32 1.0, %v2035
  %v2456 = vsub.f32 1.0, %v2037
  %v2457 = vsub.f32 1.0, %v2039
  %v2458 = vsub.f32 1.0, %v2041
  %v2459 = vsub.f32 1.0, %v2043
  %v2460 = vsub.f32 1.0, %v2045
  %v2461 = vsub.f32 1.0, %v2047
  %v2462 = vsub.f32 1.0, %v2049
  %v2463 = vsub.f32 1.0, %v2051
  %v2464 = vsub.f32 1.0, %v2053
  %v2465 = vsub.f32 1.0, %v2055
  %v2466 = vsub.f32 1.0, %v2057
  %v2467 = vsub.f32 1.0, %v2059
  %v2468 = vsub.f32 1.0, %v2061
  %v2469 = vsub.f32 1.0, %v2063
  %v2470 = vsub.f32 1.0, %v2065
  %v2471 = vsub.f32 1.0, %v2067
  %v2472 = vsub.f32 1.0, %v2069
  %v2473 = vsub.f32 1.0, %v2071
  %v2474 = vsub.f32 1.0, %v2073
  %v2475 = vsub.f32 1.0, %v2075
  %v2476 = vsub.f32 1.0, %v2077
  %v2477 = vsub.f32 1.0, %v2079
  %v2478 = vsub.f32 1.0, %v2081
  %v2479 = vsub.f32 1.0, %v2083
  %v2480 = vsub.f32 1.0, %v2085
  %v2481 = vsub.f32 1.0, %v2087
  %v2482 = vsub.f32 1.0, %v2089
  %v2483 = vsub.f32 1.0, %v2091
  %v2484 = vsub.f32 1.0, %v2093
  %v2485 = vsub.f32 1.0, %v2095
  %v2486 = vsub.f32 1.0, %v2097
  %v2487 = vsub.f32 1.0, %v2099
  %v2488 = vsub.f32 1.0, %v2101
  %v2489 = vsub.f32 1.0, %v2103
  %v2490 = vsel %vm1335, %v2297, %v1012
  %v2491 = vsel %vm1335, %v2299, %v1017
  %v2492 = vsel %vm1335, %v2301, %v1022
  %v2493 = vsel %vm1335, %v2303, %v1027
  %v2494 = vsel %vm1335, %v2305, %v1032
  %v2495 = vsel %vm1335, %v2307, %v1037
  %v2496 = vsel %vm1335, %v2309, %v1042
  %v2497 = vsel %vm1335, %v2311, %v1047
  %v2498 = vsel %vm1335, %v2313, %v1052
  %v2499 = vsel %vm1335, %v2315, %v1057
  %v2500 = vsel %vm1335, %v2317, %v1062
  %v2501 = vsel %vm1335, %v2319, %v1067
  %v2502 = vsel %vm1335, %v2321, %v1072
  %v2503 = vsel %vm1335, %v2323, %v1077
  %v2504 = vsel %vm1335, %v2325, %v1082
  %v2505 = vsel %vm1335, %v2327, %v1087
  %v2506 = vsel %vm1335, %v2329, %v1092
  %v2507 = vsel %vm1335, %v2331, %v1097
  %v2508 = vsel %vm1335, %v2333, %v1102
  %v2509 = vsel %vm1335, %v2335, %v1107
  %v2510 = vsel %vm1335, %v2337, %v1112
  %v2511 = vsel %vm1335, %v2339, %v1117
  %v2512 = vsel %vm1335, %v2341, %v1122
  %v2513 = vsel %vm1335, %v2343, %v1127
  %v2514 = vsel %vm1335, %v2345, %v1132
  %v2515 = vsel %vm1335, %v2347, %v1137
  %v2516 = vsel %vm1335, %v2349, %v1142
  %v2517 = vsel %vm1335, %v2351, %v1147
  %v2518 = vsel %vm1335, %v2353, %v1152
  %v2519 = vsel %vm1335, %v2355, %v1157
  %v2520 = vsel %vm1335, %v2357, %v1162
  %v2521 = vsel %vm1335, %v2359, %v1167
  %v2522 = vsel %vm1335, %v2361, %v1172
  %v2523 = vsel %vm1335, %v2363, %v1177
  %v2524 = vsel %vm1335, %v2365, %v1182
  %v2525 = vsel %vm1335, %v2367, %v1187
  %v2526 = vsel %vm1335, %v2369, %v1192
  %v2527 = vsel %vm1335, %v2371, %v1197
  %v2528 = vsel %vm1335, %v2373, %v1202
  %v2529 = vsel %vm1335, %v2375, %v1207
  %v2530 = vsel %vm1335, %v2377, %v1212
  %v2531 = vsel %vm1335, %v2379, %v1217
  %v2532 = vsel %vm1335, %v2381, %v1222
  %v2533 = vsel %vm1335, %v2383, %v1227
  %v2534 = vsel %vm1335, %v2385, %v1232
  %v2535 = vsel %vm1335, %v2387, %v1237
  %v2536 = vsel %vm1335, %v2389, %v1242
  %v2537 = vsel %vm1335, %v2391, %v1247
  %v2538 = vsel %vm1335, %v2393, %v1252
  %v2539 = vsel %vm1335, %v2395, %v1257
  %v2540 = vsel %vm1335, %v2397, %v1262
  %v2541 = vsel %vm1335, %v2399, %v1267
  %v2542 = vsel %vm1335, %v2401, %v1272
  %v2543 = vsel %vm1335, %v2403, %v1277
  %v2544 = vsel %vm1335, %v2405, %v1282
  %v2545 = vsel %vm1335, %v2407, %v1287
  %v2546 = vsel %vm1335, %v2409, %v1292
  %v2547 = vsel %vm1335, %v2411, %v1297
  %v2548 = vsel %vm1335, %v2413, %v1302
  %v2549 = vsel %vm1335, %v2415, %v1307
  %v2550 = vsel %vm1335, %v2417, %v1312
  %v2551 = vsel %vm1335, %v2419, %v1317
  %v2552 = vsel %vm1335, %v2421, %v1322
  %v2553 = vsel %vm1335, %v2423, %v1327
  %v2554 = vsel %vm2425, %v2426, %v2490
  %v2555 = vsel %vm2425, %v2427, %v2491
  %v2556 = vsel %vm2425, %v2428, %v2492
  %v2557 = vsel %vm2425, %v2429, %v2493
  %v2558 = vsel %vm2425, %v2430, %v2494
  %v2559 = vsel %vm2425, %v2431, %v2495
  %v2560 = vsel %vm2425, %v2432, %v2496
  %v2561 = vsel %vm2425, %v2433, %v2497
  %v2562 = vsel %vm2425, %v2434, %v2498
  %v2563 = vsel %vm2425, %v2435, %v2499
  %v2564 = vsel %vm2425, %v2436, %v2500
  %v2565 = vsel %vm2425, %v2437, %v2501
  %v2566 = vsel %vm2425, %v2438, %v2502
  %v2567 = vsel %vm2425, %v2439, %v2503
  %v2568 = vsel %vm2425, %v2440, %v2504
  %v2569 = vsel %vm2425, %v2441, %v2505
  %v2570 = vsel %vm2425, %v2442, %v2506
  %v2571 = vsel %vm2425, %v2443, %v2507
  %v2572 = vsel %vm2425, %v2444, %v2508
  %v2573 = vsel %vm2425, %v2445, %v2509
  %v2574 = vsel %vm2425, %v2446, %v2510
  %v2575 = vsel %vm2425, %v2447, %v2511
  %v2576 = vsel %vm2425, %v2448, %v2512
  %v2577 = vsel %vm2425, %v2449, %v2513
  %v2578 = vsel %vm2425, %v2450, %v2514
  %v2579 = vsel %vm2425, %v2451, %v2515
  %v2580 = vsel %vm2425, %v2452, %v2516
  %v2581 = vsel %vm2425, %v2453, %v2517
  %v2582 = vsel %vm2425, %v2454, %v2518
  %v2583 = vsel %vm2425, %v2455, %v2519
  %v2584 = vsel %vm2425, %v2456, %v2520
  %v2585 = vsel %vm2425, %v2457, %v2521
  %v2586 = vsel %vm2425, %v2458, %v2522
  %v2587 = vsel %vm2425, %v2459, %v2523
  %v2588 = vsel %vm2425, %v2460, %v2524
  %v2589 = vsel %vm2425, %v2461, %v2525
  %v2590 = vsel %vm2425, %v2462, %v2526
  %v2591 = vsel %vm2425, %v2463, %v2527
  %v2592 = vsel %vm2425, %v2464, %v2528
  %v2593 = vsel %vm2425, %v2465, %v2529
  %v2594 = vsel %vm2425, %v2466, %v2530
  %v2595 = vsel %vm2425, %v2467, %v2531
  %v2596 = vsel %vm2425, %v2468, %v2532
  %v2597 = vsel %vm2425, %v2469, %v2533
  %v2598 = vsel %vm2425, %v2470, %v2534
  %v2599 = vsel %vm2425, %v2471, %v2535
  %v2600 = vsel %vm2425, %v2472, %v2536
  %v2601 = vsel %vm2425, %v2473, %v2537
  %v2602 = vsel %vm2425, %v2474, %v2538
  %v2603 = vsel %vm2425, %v2475, %v2539
  %v2604 = vsel %vm2425, %v2476, %v2540
  %v2605 = vsel %vm2425, %v2477, %v2541
  %v2606 = vsel %vm2425, %v2478, %v2542
  %v2607 = vsel %vm2425, %v2479, %v2543
  %v2608 = vsel %vm2425, %v2480, %v2544
  %v2609 = vsel %vm2425, %v2481, %v2545
  %v2610 = vsel %vm2425, %v2482, %v2546
  %v2611 = vsel %vm2425, %v2483, %v2547
  %v2612 = vsel %vm2425, %v2484, %v2548
  %v2613 = vsel %vm2425, %v2485, %v2549
  %v2614 = vsel %vm2425, %v2486, %v2550
  %v2615 = vsel %vm2425, %v2487, %v2551
  %v2616 = vsel %vm2425, %v2488, %v2552
  %v2617 = vsel %vm2425, %v2489, %v2553
  %v2618 = vsel %vm2424, %v1977, %v2554
  %v2619 = vsel %vm2424, %v1979, %v2555
  %v2620 = vsel %vm2424, %v1981, %v2556
  %v2621 = vsel %vm2424, %v1983, %v2557
  %v2622 = vsel %vm2424, %v1985, %v2558
  %v2623 = vsel %vm2424, %v1987, %v2559
  %v2624 = vsel %vm2424, %v1989, %v2560
  %v2625 = vsel %vm2424, %v1991, %v2561
  %v2626 = vsel %vm2424, %v1993, %v2562
  %v2627 = vsel %vm2424, %v1995, %v2563
  %v2628 = vsel %vm2424, %v1997, %v2564
  %v2629 = vsel %vm2424, %v1999, %v2565
  %v2630 = vsel %vm2424, %v2001, %v2566
  %v2631 = vsel %vm2424, %v2003, %v2567
  %v2632 = vsel %vm2424, %v2005, %v2568
  %v2633 = vsel %vm2424, %v2007, %v2569
  %v2634 = vsel %vm2424, %v2009, %v2570
  %v2635 = vsel %vm2424, %v2011, %v2571
  %v2636 = vsel %vm2424, %v2013, %v2572
  %v2637 = vsel %vm2424, %v2015, %v2573
  %v2638 = vsel %vm2424, %v2017, %v2574
  %v2639 = vsel %vm2424, %v2019, %v2575
  %v2640 = vsel %vm2424, %v2021, %v2576
  %v2641 = vsel %vm2424, %v2023, %v2577
  %v2642 = vsel %vm2424, %v2025, %v2578
  %v2643 = vsel %vm2424, %v2027, %v2579
  %v2644 = vsel %vm2424, %v2029, %v2580
  %v2645 = vsel %vm2424, %v2031, %v2581
  %v2646 = vsel %vm2424, %v2033, %v2582
  %v2647 = vsel %vm2424, %v2035, %v2583
  %v2648 = vsel %vm2424, %v2037, %v2584
  %v2649 = vsel %vm2424, %v2039, %v2585
  %v2650 = vsel %vm2424, %v2041, %v2586
  %v2651 = vsel %vm2424, %v2043, %v2587
  %v2652 = vsel %vm2424, %v2045, %v2588
  %v2653 = vsel %vm2424, %v2047, %v2589
  %v2654 = vsel %vm2424, %v2049, %v2590
  %v2655 = vsel %vm2424, %v2051, %v2591
  %v2656 = vsel %vm2424, %v2053, %v2592
  %v2657 = vsel %vm2424, %v2055, %v2593
  %v2658 = vsel %vm2424, %v2057, %v2594
  %v2659 = vsel %vm2424, %v2059, %v2595
  %v2660 = vsel %vm2424, %v2061, %v2596
  %v2661 = vsel %vm2424, %v2063, %v2597
  %v2662 = vsel %vm2424, %v2065, %v2598
  %v2663 = vsel %vm2424, %v2067, %v2599
  %v2664 = vsel %vm2424, %v2069, %v2600
  %v2665 = vsel %vm2424, %v2071, %v2601
  %v2666 = vsel %vm2424, %v2073, %v2602
  %v2667 = vsel %vm2424, %v2075, %v2603
  %v2668 = vsel %vm2424, %v2077, %v2604
  %v2669 = vsel %vm2424, %v2079, %v2605
  %v2670 = vsel %vm2424, %v2081, %v2606
  %v2671 = vsel %vm2424, %v2083, %v2607
  %v2672 = vsel %vm2424, %v2085, %v2608
  %v2673 = vsel %vm2424, %v2087, %v2609
  %v2674 = vsel %vm2424, %v2089, %v2610
  %v2675 = vsel %vm2424, %v2091, %v2611
  %v2676 = vsel %vm2424, %v2093, %v2612
  %v2677 = vsel %vm2424, %v2095, %v2613
  %v2678 = vsel %vm2424, %v2097, %v2614
  %v2679 = vsel %vm2424, %v2099, %v2615
  %v2680 = vsel %vm2424, %v2101, %v2616
  %v2681 = vsel %vm2424, %v2103, %v2617
  %2682 = vst [vmem:[%s5] sm:$0xff] %v2618
  %2683 = vst [vmem:[%s5 + $0x8] sm:$0xff] %v2619
  %2684 = vst [vmem:[%s5 + $0x10] sm:$0xff] %v2620
  %2685 = vst [vmem:[%s5 + $0x18] sm:$0xff] %v2621
  %2686 = vst [vmem:[%s5 + $0x20] sm:$0xff] %v2622
  %2687 = vst [vmem:[%s5 + $0x28] sm:$0xff] %v2623
  %2688 = vst [vmem:[%s5 + $0x30] sm:$0xff] %v2624
  %2689 = vst [vmem:[%s5 + $0x38] sm:$0xff] %v2625
  %2690 = vst [vmem:[%s5 + $0x40] sm:$0xff] %v2626
  %2691 = vst [vmem:[%s5 + $0x48] sm:$0xff] %v2627
  %2692 = vst [vmem:[%s5 + $0x50] sm:$0xff] %v2628
  %2693 = vst [vmem:[%s5 + $0x58] sm:$0xff] %v2629
  %2694 = vst [vmem:[%s5 + $0x60] sm:$0xff] %v2630
  %2695 = vst [vmem:[%s5 + $0x68] sm:$0xff] %v2631
  %2696 = vst [vmem:[%s5 + $0x70] sm:$0xff] %v2632
  %2697 = vst [vmem:[%s5 + $0x78] sm:$0xff] %v2633
  %2698 = vst [vmem:[%s5 + $0x80] sm:$0xff] %v2634
  %2699 = vst [vmem:[%s5 + $0x88] sm:$0xff] %v2635
  %2700 = vst [vmem:[%s5 + $0x90] sm:$0xff] %v2636
  %2701 = vst [vmem:[%s5 + $0x98] sm:$0xff] %v2637
  %2702 = vst [vmem:[%s5 + $0xa0] sm:$0xff] %v2638
  %2703 = vst [vmem:[%s5 + $0xa8] sm:$0xff] %v2639
  %2704 = vst [vmem:[%s5 + $0xb0] sm:$0xff] %v2640
  %2705 = vst [vmem:[%s5 + $0xb8] sm:$0xff] %v2641
  %2706 = vst [vmem:[%s5 + $0xc0] sm:$0xff] %v2642
  %2707 = vst [vmem:[%s5 + $0xc8] sm:$0xff] %v2643
  %2708 = vst [vmem:[%s5 + $0xd0] sm:$0xff] %v2644
  %2709 = vst [vmem:[%s5 + $0xd8] sm:$0xff] %v2645
  %2710 = vst [vmem:[%s5 + $0xe0] sm:$0xff] %v2646
  %2711 = vst [vmem:[%s5 + $0xe8] sm:$0xff] %v2647
  %2712 = vst [vmem:[%s5 + $0xf0] sm:$0xff] %v2648
  %2713 = vst [vmem:[%s5 + $0xf8] sm:$0xff] %v2649
  %2714 = vst [vmem:[%s5 + $0x100] sm:$0xff] %v2650
  %2715 = vst [vmem:[%s5 + $0x108] sm:$0xff] %v2651
  %2716 = vst [vmem:[%s5 + $0x110] sm:$0xff] %v2652
  %2717 = vst [vmem:[%s5 + $0x118] sm:$0xff] %v2653
  %2718 = vst [vmem:[%s5 + $0x120] sm:$0xff] %v2654
  %2719 = vst [vmem:[%s5 + $0x128] sm:$0xff] %v2655
  %2720 = vst [vmem:[%s5 + $0x130] sm:$0xff] %v2656
  %2721 = vst [vmem:[%s5 + $0x138] sm:$0xff] %v2657
  %2722 = vst [vmem:[%s5 + $0x140] sm:$0xff] %v2658
  %2723 = vst [vmem:[%s5 + $0x148] sm:$0xff] %v2659
  %2724 = vst [vmem:[%s5 + $0x150] sm:$0xff] %v2660
  %2725 = vst [vmem:[%s5 + $0x158] sm:$0xff] %v2661
  %2726 = vst [vmem:[%s5 + $0x160] sm:$0xff] %v2662
  %2727 = vst [vmem:[%s5 + $0x168] sm:$0xff] %v2663
  %2728 = vst [vmem:[%s5 + $0x170] sm:$0xff] %v2664
  %2729 = vst [vmem:[%s5 + $0x178] sm:$0xff] %v2665
  %2730 = vst [vmem:[%s5 + $0x180] sm:$0xff] %v2666
  %2731 = vst [vmem:[%s5 + $0x188] sm:$0xff] %v2667
  %2732 = vst [vmem:[%s5 + $0x190] sm:$0xff] %v2668
  %2733 = vst [vmem:[%s5 + $0x198] sm:$0xff] %v2669
  %2734 = vst [vmem:[%s5 + $0x1a0] sm:$0xff] %v2670
  %2735 = vst [vmem:[%s5 + $0x1a8] sm:$0xff] %v2671
  %2736 = vst [vmem:[%s5 + $0x1b0] sm:$0xff] %v2672
  %2737 = vst [vmem:[%s5 + $0x1b8] sm:$0xff] %v2673
  %2738 = vst [vmem:[%s5 + $0x1c0] sm:$0xff] %v2674
  %2739 = vst [vmem:[%s5 + $0x1c8] sm:$0xff] %v2675
  %2740 = vst [vmem:[%s5 + $0x1d0] sm:$0xff] %v2676
  %2741 = vst [vmem:[%s5 + $0x1d8] sm:$0xff] %v2677
  %2742 = vst [vmem:[%s5 + $0x1e0] sm:$0xff] %v2678
  %2743 = vst [vmem:[%s5 + $0x1e8] sm:$0xff] %v2679
  %2744 = vst [vmem:[%s5 + $0x1f0] sm:$0xff] %v2680
  %2745 = vst [vmem:[%s5 + $0x1f8] sm:$0xff] %v2681
  // Predicated region
  $region22: #{multi_task_forward.1} parent=0 // pred_check
    _
  $region23: #{multi_task_forward.1} parent=0 // pred_check_branch
    %2747 = sbr.rel (0) target = $region25
  $region24: #{multi_task_forward.1} parent=0 // pred_region
    _
  $region25: #{multi_task_forward.1} parent=0 // pred_fallthru
    _
  // Predicated region
  $region26: #{multi_task_forward.1} parent=0 // pred_check
    _
  $region27: #{multi_task_forward.1} parent=0 // pred_check_branch
    %2749 = sbr.rel (0) target = $region29
  $region28: #{multi_task_forward.1} parent=0 // pred_region
    _
  $region29: #{multi_task_forward.1} parent=0 // pred_fallthru
    _

</llo_original>
